<compile_context>
chip_gen: v7x
topology: tpu7x:2x2x1
jax: 0.10.0
libtpu: 0.0.40
codegen_flags: <defaults>
</compile_context>

<pallas_src>
import jax
import jax.numpy as jnp
from jax import lax
from jax.experimental import pallas as pl
from jax.experimental.pallas import tpu as pltpu

# ---------------- model dimensions (small, consistent with the forward) ------
B, H, W = 2, 16, 16          # batch, spatial
C_IN = 3                     # RGB input to encoder
C_GEO = 2                    # geometry map channels (num_labels=2)
C_FEAT = 32                  # feature width ("hidden")
STYLE_DIM = 32               # style / latent width (stand-in for 256)
N_LATENT = 8                 # number of W+ codes produced by the encoder
KP = 32                      # padded im2col contraction: 27 patch cols + 4 zeros + 1 ones(bias) col
LRELU_GAIN = 1.4142135623730951   # sqrt(2) gain of StyleGAN2 FusedLeakyReLU


# ---------------- fused forward kernel (one batch element per grid step) -----
def _align_fused_kernel(patches_ref, geo_ref, mask_ref, bg_ref,
                        w_ec_ref, w_fc_ref, b_fc_ref, w_geo_ref,
                        w_mod_ref, b_mod_ref, w_conv_ref, b_act_ref,
                        w_rgb_ref, b_rgb_ref, o_ref):
    # -------- encoder: codes = self.encoder(x) (torch.no_grad == inference) --------
    # 3x3 conv as im2col matmul; conv bias is folded into the ones column of `patches`.
    feat = jnp.dot(patches_ref[0], w_ec_ref[...],
                   preferred_element_type=jnp.float32)                      # (HW, C_FEAT)
    feat = jnp.maximum(feat, 0.0)
    # global average pool as a (1,HW) ones matmul — MXU, avoids a long sublane reduce.
    hw = feat.shape[0]
    pooled = jnp.dot(jnp.full((1, hw), 1.0 / hw, jnp.float32), feat,
                     preferred_element_type=jnp.float32)                    # (1, C_FEAT)
    codes = jnp.dot(pooled, w_fc_ref[...],
                    preferred_element_type=jnp.float32) + b_fc_ref[...]     # (1, N_LATENT*STYLE_DIM)

    # -------- decoder: channels-first (C, HW) so HW is on the 128-lane axis --------
    # geometry embedding; bias folded into the ones row appended to geo_ref.
    x = jnp.dot(w_geo_ref[...], geo_ref[0],
                preferred_element_type=jnp.float32)                         # (C_FEAT, HW)
    x = jnp.where(x >= 0.0, x, 0.2 * x)

    # two style-modulated + demodulated 1x1 convs; input_is_latent=True (mapping MLP
    # bypassed), randomize_noise=False (noise injection omitted).
    for layer in (0, 1):                                                    # static unroll
        code = codes[:, layer * STYLE_DIM:(layer + 1) * STYLE_DIM]          # (1, STYLE_DIM)
        s = jnp.dot(code, w_mod_ref[layer],
                    preferred_element_type=jnp.float32) + b_mod_ref[layer]  # (1, C_FEAT) style scale
        w_s = w_conv_ref[layer] * s                                         # (Cout, Cin) modulated weight
        demod = lax.rsqrt(jnp.sum(w_s * w_s, axis=1, keepdims=True) + 1e-8) # (Cout, 1)
        x = jnp.dot(w_s * demod, x,
                    preferred_element_type=jnp.float32) + b_act_ref[layer]  # (C_FEAT, HW)
        x = jnp.where(x >= 0.0, x, 0.2 * x) * LRELU_GAIN                    # FusedLeakyReLU

    # -------- toRGB (1x1 conv) + mask/background compositing --------
    rgb = jnp.dot(w_rgb_ref[...], x,
                  preferred_element_type=jnp.float32) + b_rgb_ref[...]      # (3, HW)
    m = mask_ref[0]                                                         # (1, HW)
    o_ref[0] = (rgb * m + bg_ref[0] * (1.0 - m)).astype(o_ref.dtype)


# ---------------- glue: 3x3 im2col (SAME padding), plain JAX -----------------
def im2col_3x3(x_nhwc):
    # TODO(synk): at real 256x256 resolution fuse this into the kernel as 9 shifted
    # accumulating dots instead of materializing the 9x-duplicated patch tensor in HBM.
    Bb, Hh, Ww, C = x_nhwc.shape
    xp = jnp.pad(x_nhwc, ((0, 0), (1, 1), (1, 1), (0, 0)))
    patches = [xp[:, dy:dy + Hh, dx:dx + Ww, :] for dy in range(3) for dx in range(3)]
    return jnp.concatenate(patches, axis=-1).reshape(Bb, Hh * Ww, 9 * C)


# ---------------- deterministic parameter init (kernel-ready layout) ---------
def init_params(key):
    ks = jax.random.split(key, 8)

    def n(k, shape, scale):
        return jax.random.normal(k, shape, jnp.float32) * scale

    # encoder conv weight: 27 patch rows + 4 zero-pad rows + 1 bias row (bias = 0)
    # TODO(synk): full IR-SE-50 backbone with gradual style heads is not reproduced.
    w_enc_conv = jnp.concatenate(
        [n(ks[0], (9 * C_IN, C_FEAT), 0.2),
         jnp.zeros((KP - 9 * C_IN - 1, C_FEAT), jnp.float32),
         jnp.zeros((1, C_FEAT), jnp.float32)], axis=0)                 # (KP, C_FEAT)
    # geometry embedding weight with bias folded as last column (bias = 0)
    w_geo = jnp.concatenate(
        [n(ks[2], (C_FEAT, C_GEO), 0.5),
         jnp.zeros((C_FEAT, 1), jnp.float32)], axis=1)                 # (C_FEAT, C_GEO+1)

    return {
        "w_enc_conv": w_enc_conv,
        "w_enc_fc": n(ks[1], (C_FEAT, N_LATENT * STYLE_DIM), 0.2),
        "b_enc_fc": jnp.zeros((1, N_LATENT * STYLE_DIM), jnp.float32),
        "w_geo": w_geo,
        # decoder (simplified TeethGenerator / StyleGAN2): 2 stacked modulated convs
        "w_mod": n(ks[3], (2, STYLE_DIM, C_FEAT), 0.2),                # style affines
        "b_mod": jnp.ones((2, 1, C_FEAT), jnp.float32),                # EqualLinear bias_init=1
        "w_conv_t": n(ks[4], (2, C_FEAT, C_FEAT), 0.2),                # pre-transposed (Cout, Cin)
        "b_act": jnp.zeros((2, C_FEAT, 1), jnp.float32),               # FusedLeakyReLU bias
        "w_rgb_t": n(ks[5], (3, C_FEAT), 0.2),                         # toRGB, pre-transposed
        "b_rgb": jnp.zeros((3, 1), jnp.float32),
    }


# ---------------- alignModel.forward ------------------------------------------
def align_model_forward(params, x, geometry, background, mask):
    Bb, _, Hh, Ww = x.shape
    HW = Hh * Ww

    # wrapper-side layout plumbing (no compute):
    # encoder input: NCHW -> NHWC -> im2col rows, padded 27 -> KP with trailing ones col.
    patches = im2col_3x3(jnp.transpose(x, (0, 2, 3, 1)))               # (B, HW, 27)
    patches = jnp.concatenate(
        [patches,
         jnp.zeros((Bb, HW, KP - 9 * C_IN - 1), jnp.float32),
         jnp.ones((Bb, HW, 1), jnp.float32)], axis=-1)                 # (B, HW, KP)
    # decoder inputs stay channels-first: NCHW just reshapes, HW is lane-dense.
    geo = jnp.concatenate(
        [geometry.reshape(Bb, C_GEO, HW),
         jnp.ones((Bb, 1, HW), jnp.float32)], axis=1)                  # (B, C_GEO+1, HW)
    mask_f = mask.reshape(Bb, 1, HW)
    bg_f = background.reshape(Bb, 3, HW)

    nls = N_LATENT * STYLE_DIM
    img = pl.pallas_call(
        _align_fused_kernel,
        out_shape=jax.ShapeDtypeStruct((Bb, 3, HW), jnp.float32),
        grid=(Bb,),
        in_specs=[
            pl.BlockSpec((1, HW, KP), lambda b: (b, 0, 0)),            # im2col patches
            pl.BlockSpec((1, C_GEO + 1, HW), lambda b: (b, 0, 0)),     # geometry (+ones row)
            pl.BlockSpec((1, 1, HW), lambda b: (b, 0, 0)),             # mask (lane-dense)
            pl.BlockSpec((1, 3, HW), lambda b: (b, 0, 0)),             # background (lane-dense)
            pl.BlockSpec((KP, C_FEAT), lambda b: (0, 0)),              # w_enc_conv (+bias row)
            pl.BlockSpec((C_FEAT, nls), lambda b: (0, 0)),             # w_enc_fc
            pl.BlockSpec((1, nls), lambda b: (0, 0)),                  # b_enc_fc
            pl.BlockSpec((C_FEAT, C_GEO + 1), lambda b: (0, 0)),       # w_geo (+bias col)
            pl.BlockSpec((2, STYLE_DIM, C_FEAT), lambda b: (0, 0, 0)), # w_mod stack
            pl.BlockSpec((2, 1, C_FEAT), lambda b: (0, 0, 0)),         # b_mod stack
            pl.BlockSpec((2, C_FEAT, C_FEAT), lambda b: (0, 0, 0)),    # w_conv_t stack
            pl.BlockSpec((2, C_FEAT, 1), lambda b: (0, 0, 0)),         # b_act stack
            pl.BlockSpec((3, C_FEAT), lambda b: (0, 0)),               # w_rgb_t
            pl.BlockSpec((3, 1), lambda b: (0, 0)),                    # b_rgb
        ],
        out_specs=pl.BlockSpec((1, 3, HW), lambda b: (b, 0, 0)),
        compiler_params=pltpu.CompilerParams(dimension_semantics=("parallel",)),
    )(patches, geo, mask_f, bg_f,
      params["w_enc_conv"], params["w_enc_fc"], params["b_enc_fc"], params["w_geo"],
      params["w_mod"], params["b_mod"], params["w_conv_t"], params["b_act"],
      params["w_rgb_t"], params["b_rgb"])

    return img.reshape(Bb, 3, Hh, Ww)        # already channel-first: no transpose needed


# ---------------- main ---------------------------------------------------------
if __name__ == "__main__":
    key = jax.random.PRNGKey(0)
    k_p, k_x, k_g, k_b, k_m = jax.random.split(key, 5)

    params = init_params(k_p)
    x = jax.random.normal(k_x, (B, C_IN, H, W), jnp.float32)
    geometry = jax.random.normal(k_g, (B, C_GEO, H, W), jnp.float32)
    background = jax.random.normal(k_b, (B, 3, H, W), jnp.float32)
    mask = (jax.random.uniform(k_m, (B, 1, H, W), jnp.float32) > 0.5).astype(jnp.float32)

    image = jax.jit(align_model_forward)(params, x, geometry, background, mask)
    jax.block_until_ready(image)
    assert image.shape == (B, 3, H, W) and image.dtype == jnp.float32
    print("KERNEL_OK")
</pallas_src>

<mosaic_0001>
module attributes {stable_mosaic.version = 11 : i64} {
  func.func @_align_fused_kernel(%arg0: i32, %arg1: memref<1x256x32xf32, #tpu.memory_space<vmem>>, %arg2: memref<1x3x256xf32, #tpu.memory_space<vmem>>, %arg3: memref<1x1x256xf32, #tpu.memory_space<vmem>>, %arg4: memref<1x3x256xf32, #tpu.memory_space<vmem>>, %arg5: memref<32x32xf32, #tpu.memory_space<vmem>>, %arg6: memref<32x256xf32, #tpu.memory_space<vmem>>, %arg7: memref<1x256xf32, #tpu.memory_space<vmem>>, %arg8: memref<32x3xf32, #tpu.memory_space<vmem>>, %arg9: memref<2x32x32xf32, #tpu.memory_space<vmem>>, %arg10: memref<2x1x32xf32, #tpu.memory_space<vmem>>, %arg11: memref<2x32x32xf32, #tpu.memory_space<vmem>>, %arg12: memref<2x32x1xf32, #tpu.memory_space<vmem>>, %arg13: memref<3x32xf32, #tpu.memory_space<vmem>>, %arg14: memref<3x1xf32, #tpu.memory_space<vmem>>, %arg15: memref<1x3x256xf32, #tpu.memory_space<vmem>>) attributes {dimension_semantics = [#tpu.dimension_semantics<parallel>], iteration_bounds = array<i64: 2>, scalar_prefetch = 0 : i64, scratch_operands = 0 : i64, tpu.core_type = #tpu.core_type<tc>, window_params = [{transform_indices = @transform_0, window_bounds = array<i64: 1, 256, 32>}, {transform_indices = @transform_1, window_bounds = array<i64: 1, 3, 256>}, {transform_indices = @transform_2, window_bounds = array<i64: 1, 1, 256>}, {transform_indices = @transform_3, window_bounds = array<i64: 1, 3, 256>}, {pipeline_mode = #tpu.pipeline_mode<synchronous>, transform_indices = @transform_4, window_bounds = array<i64: 32, 32>}, {pipeline_mode = #tpu.pipeline_mode<synchronous>, transform_indices = @transform_5, window_bounds = array<i64: 32, 256>}, {pipeline_mode = #tpu.pipeline_mode<synchronous>, transform_indices = @transform_6, window_bounds = array<i64: 1, 256>}, {pipeline_mode = #tpu.pipeline_mode<synchronous>, transform_indices = @transform_7, window_bounds = array<i64: 32, 3>}, {pipeline_mode = #tpu.pipeline_mode<synchronous>, transform_indices = @transform_8, window_bounds = array<i64: 2, 32, 32>}, {pipeline_mode = #tpu.pipeline_mode<synchronous>, transform_indices = @transform_9, window_bounds = array<i64: 2, 1, 32>}, {pipeline_mode = #tpu.pipeline_mode<synchronous>, transform_indices = @transform_10, window_bounds = array<i64: 2, 32, 32>}, {pipeline_mode = #tpu.pipeline_mode<synchronous>, transform_indices = @transform_11, window_bounds = array<i64: 2, 32, 1>}, {pipeline_mode = #tpu.pipeline_mode<synchronous>, transform_indices = @transform_12, window_bounds = array<i64: 3, 32>}, {pipeline_mode = #tpu.pipeline_mode<synchronous>, transform_indices = @transform_13, window_bounds = array<i64: 3, 1>}, {transform_indices = @transform_14, window_bounds = array<i64: 1, 3, 256>}]} {
    %c0 = arith.constant 0 : index
    %c0_0 = arith.constant 0 : index
    %c0_1 = arith.constant 0 : index
    %0 = vector.load %arg1[%c0, %c0_0, %c0_1] : memref<1x256x32xf32, #tpu.memory_space<vmem>>, vector<1x256x32xf32>
    %1 = vector.shape_cast %0 : vector<1x256x32xf32> to vector<256x32xf32>
    %c0_2 = arith.constant 0 : index
    %c0_3 = arith.constant 0 : index
    %2 = vector.load %arg5[%c0_2, %c0_3] : memref<32x32xf32, #tpu.memory_space<vmem>>, vector<32x32xf32>
    %cst = arith.constant dense<0.000000e+00> : vector<256x32xf32>
    %3 = tpu.matmul %1, %2, %cst {dimension_numbers = #tpu.dot_dimension_numbers<[1], [0], [0], [1], [0, 0, 1, 1], [], []>} : vector<256x32xf32>, vector<32x32xf32>, vector<256x32xf32> -> vector<256x32xf32>
    %cst_4 = arith.constant 0.000000e+00 : f32
    %4 = vector.broadcast %cst_4 : f32 to vector<256x32xf32>
    %5 = arith.maximumf %3, %4 : vector<256x32xf32>
    %cst_5 = arith.constant 3.906250e-03 : f32
    %6 = vector.broadcast %cst_5 : f32 to vector<1x256xf32>
    %cst_6 = arith.constant dense<0.000000e+00> : vector<1x32xf32>
    %7 = tpu.matmul %6, %5, %cst_6 {dimension_numbers = #tpu.dot_dimension_numbers<[1], [0], [0], [1], [0, 0, 1, 1], [], []>} : vector<1x256xf32>, vector<256x32xf32>, vector<1x32xf32> -> vector<1x32xf32>
    %c0_7 = arith.constant 0 : index
    %c0_8 = arith.constant 0 : index
    %8 = vector.load %arg6[%c0_7, %c0_8] : memref<32x256xf32, #tpu.memory_space<vmem>>, vector<32x256xf32>
    %cst_9 = arith.constant dense<0.000000e+00> : vector<1x256xf32>
    %9 = tpu.matmul %7, %8, %cst_9 {dimension_numbers = #tpu.dot_dimension_numbers<[1], [0], [0], [1], [0, 0, 1, 1], [], []>} : vector<1x32xf32>, vector<32x256xf32>, vector<1x256xf32> -> vector<1x256xf32>
    %c0_10 = arith.constant 0 : index
    %c0_11 = arith.constant 0 : index
    %10 = vector.load %arg7[%c0_10, %c0_11] : memref<1x256xf32, #tpu.memory_space<vmem>>, vector<1x256xf32>
    %11 = arith.addf %9, %10 : vector<1x256xf32>
    %c0_12 = arith.constant 0 : index
    %c0_13 = arith.constant 0 : index
    %12 = vector.load %arg8[%c0_12, %c0_13] : memref<32x3xf32, #tpu.memory_space<vmem>>, vector<32x3xf32>
    %c0_14 = arith.constant 0 : index
    %c0_15 = arith.constant 0 : index
    %c0_16 = arith.constant 0 : index
    %13 = vector.load %arg2[%c0_14, %c0_15, %c0_16] : memref<1x3x256xf32, #tpu.memory_space<vmem>>, vector<1x3x256xf32>
    %14 = vector.shape_cast %13 : vector<1x3x256xf32> to vector<3x256xf32>
    %cst_17 = arith.constant dense<0.000000e+00> : vector<32x256xf32>
    %15 = tpu.matmul %12, %14, %cst_17 {dimension_numbers = #tpu.dot_dimension_numbers<[1], [0], [0], [1], [0, 0, 1, 1], [], []>} : vector<32x3xf32>, vector<3x256xf32>, vector<32x256xf32> -> vector<32x256xf32>
    %cst_18 = arith.constant 0.000000e+00 : f32
    %16 = vector.broadcast %cst_18 : f32 to vector<32x256xf32>
    %17 = arith.cmpf oge, %15, %16 : vector<32x256xf32>
    %cst_19 = arith.constant 2.000000e-01 : f32
    %18 = vector.broadcast %cst_19 : f32 to vector<32x256xf32>
    %19 = arith.mulf %18, %15 : vector<32x256xf32>
    %20 = arith.select %17, %15, %19 : vector<32x256xi1>, vector<32x256xf32>
    %21 = vector.extract_strided_slice %11 {offsets = [0, 0], sizes = [1, 32], strides = [1, 1]} : vector<1x256xf32> to vector<1x32xf32>
    %c0_20 = arith.constant 0 : index
    %c0_21 = arith.constant 0 : index
    %c0_22 = arith.constant 0 : index
    %22 = vector.load %arg9[%c0_20, %c0_21, %c0_22] : memref<2x32x32xf32, #tpu.memory_space<vmem>>, vector<1x32x32xf32>
    %23 = vector.shape_cast %22 : vector<1x32x32xf32> to vector<32x32xf32>
    %cst_23 = arith.constant dense<0.000000e+00> : vector<1x32xf32>
    %24 = tpu.matmul %21, %23, %cst_23 {dimension_numbers = #tpu.dot_dimension_numbers<[1], [0], [0], [1], [0, 0, 1, 1], [], []>} : vector<1x32xf32>, vector<32x32xf32>, vector<1x32xf32> -> vector<1x32xf32>
    %c0_24 = arith.constant 0 : index
    %c0_25 = arith.constant 0 : index
    %c0_26 = arith.constant 0 : index
    %25 = vector.load %arg10[%c0_24, %c0_25, %c0_26] : memref<2x1x32xf32, #tpu.memory_space<vmem>>, vector<1x1x32xf32>
    %26 = vector.shape_cast %25 : vector<1x1x32xf32> to vector<1x32xf32>
    %27 = arith.addf %24, %26 : vector<1x32xf32>
    %c0_27 = arith.constant 0 : index
    %c0_28 = arith.constant 0 : index
    %c0_29 = arith.constant 0 : index
    %28 = vector.load %arg11[%c0_27, %c0_28, %c0_29] : memref<2x32x32xf32, #tpu.memory_space<vmem>>, vector<1x32x32xf32>
    %29 = vector.shape_cast %28 : vector<1x32x32xf32> to vector<32x32xf32>
    %30 = vector.broadcast %27 : vector<1x32xf32> to vector<32x32xf32>
    %31 = arith.mulf %29, %30 : vector<32x32xf32>
    %32 = arith.mulf %31, %31 : vector<32x32xf32>
    %cst_30 = arith.constant dense<0.000000e+00> : vector<32xf32>
    %33 = vector.multi_reduction <add>, %32, %cst_30 [1] : vector<32x32xf32> to vector<32xf32>
    %34 = vector.shape_cast %33 : vector<32xf32> to vector<32x1xf32>
    %cst_31 = arith.constant 9.99999993E-9 : f32
    %35 = vector.broadcast %cst_31 : f32 to vector<32x1xf32>
    %36 = arith.addf %34, %35 : vector<32x1xf32>
    %37 = math.rsqrt %36 : vector<32x1xf32>
    %38 = vector.broadcast %37 : vector<32x1xf32> to vector<32x32xf32>
    %39 = arith.mulf %31, %38 : vector<32x32xf32>
    %cst_32 = arith.constant dense<0.000000e+00> : vector<32x256xf32>
    %40 = tpu.matmul %39, %20, %cst_32 {dimension_numbers = #tpu.dot_dimension_numbers<[1], [0], [0], [1], [0, 0, 1, 1], [], []>} : vector<32x32xf32>, vector<32x256xf32>, vector<32x256xf32> -> vector<32x256xf32>
    %c0_33 = arith.constant 0 : index
    %c0_34 = arith.constant 0 : index
    %c0_35 = arith.constant 0 : index
    %41 = vector.load %arg12[%c0_33, %c0_34, %c0_35] : memref<2x32x1xf32, #tpu.memory_space<vmem>>, vector<1x32x1xf32>
    %42 = vector.shape_cast %41 : vector<1x32x1xf32> to vector<32x1xf32>
    %43 = vector.broadcast %42 : vector<32x1xf32> to vector<32x256xf32>
    %44 = arith.addf %40, %43 : vector<32x256xf32>
    %cst_36 = arith.constant 0.000000e+00 : f32
    %45 = vector.broadcast %cst_36 : f32 to vector<32x256xf32>
    %46 = arith.cmpf oge, %44, %45 : vector<32x256xf32>
    %cst_37 = arith.constant 2.000000e-01 : f32
    %47 = vector.broadcast %cst_37 : f32 to vector<32x256xf32>
    %48 = arith.mulf %47, %44 : vector<32x256xf32>
    %49 = arith.select %46, %44, %48 : vector<32x256xi1>, vector<32x256xf32>
    %cst_38 = arith.constant 1.41421354 : f32
    %50 = vector.broadcast %cst_38 : f32 to vector<32x256xf32>
    %51 = arith.mulf %49, %50 : vector<32x256xf32>
    %52 = vector.extract_strided_slice %11 {offsets = [0, 32], sizes = [1, 32], strides = [1, 1]} : vector<1x256xf32> to vector<1x32xf32>
    %c1 = arith.constant 1 : index
    %c0_39 = arith.constant 0 : index
    %c0_40 = arith.constant 0 : index
    %53 = vector.load %arg9[%c1, %c0_39, %c0_40] : memref<2x32x32xf32, #tpu.memory_space<vmem>>, vector<1x32x32xf32>
    %54 = vector.shape_cast %53 : vector<1x32x32xf32> to vector<32x32xf32>
    %cst_41 = arith.constant dense<0.000000e+00> : vector<1x32xf32>
    %55 = tpu.matmul %52, %54, %cst_41 {dimension_numbers = #tpu.dot_dimension_numbers<[1], [0], [0], [1], [0, 0, 1, 1], [], []>} : vector<1x32xf32>, vector<32x32xf32>, vector<1x32xf32> -> vector<1x32xf32>
    %c1_42 = arith.constant 1 : index
    %c0_43 = arith.constant 0 : index
    %c0_44 = arith.constant 0 : index
    %56 = vector.load %arg10[%c1_42, %c0_43, %c0_44] : memref<2x1x32xf32, #tpu.memory_space<vmem>>, vector<1x1x32xf32>
    %57 = vector.shape_cast %56 : vector<1x1x32xf32> to vector<1x32xf32>
    %58 = arith.addf %55, %57 : vector<1x32xf32>
    %c1_45 = arith.constant 1 : index
    %c0_46 = arith.constant 0 : index
    %c0_47 = arith.constant 0 : index
    %59 = vector.load %arg11[%c1_45, %c0_46, %c0_47] : memref<2x32x32xf32, #tpu.memory_space<vmem>>, vector<1x32x32xf32>
    %60 = vector.shape_cast %59 : vector<1x32x32xf32> to vector<32x32xf32>
    %61 = vector.broadcast %58 : vector<1x32xf32> to vector<32x32xf32>
    %62 = arith.mulf %60, %61 : vector<32x32xf32>
    %63 = arith.mulf %62, %62 : vector<32x32xf32>
    %cst_48 = arith.constant dense<0.000000e+00> : vector<32xf32>
    %64 = vector.multi_reduction <add>, %63, %cst_48 [1] : vector<32x32xf32> to vector<32xf32>
    %65 = vector.shape_cast %64 : vector<32xf32> to vector<32x1xf32>
    %cst_49 = arith.constant 9.99999993E-9 : f32
    %66 = vector.broadcast %cst_49 : f32 to vector<32x1xf32>
    %67 = arith.addf %65, %66 : vector<32x1xf32>
    %68 = math.rsqrt %67 : vector<32x1xf32>
    %69 = vector.broadcast %68 : vector<32x1xf32> to vector<32x32xf32>
    %70 = arith.mulf %62, %69 : vector<32x32xf32>
    %cst_50 = arith.constant dense<0.000000e+00> : vector<32x256xf32>
    %71 = tpu.matmul %70, %51, %cst_50 {dimension_numbers = #tpu.dot_dimension_numbers<[1], [0], [0], [1], [0, 0, 1, 1], [], []>} : vector<32x32xf32>, vector<32x256xf32>, vector<32x256xf32> -> vector<32x256xf32>
    %c1_51 = arith.constant 1 : index
    %c0_52 = arith.constant 0 : index
    %c0_53 = arith.constant 0 : index
    %72 = vector.load %arg12[%c1_51, %c0_52, %c0_53] : memref<2x32x1xf32, #tpu.memory_space<vmem>>, vector<1x32x1xf32>
    %73 = vector.shape_cast %72 : vector<1x32x1xf32> to vector<32x1xf32>
    %74 = vector.broadcast %73 : vector<32x1xf32> to vector<32x256xf32>
    %75 = arith.addf %71, %74 : vector<32x256xf32>
    %cst_54 = arith.constant 0.000000e+00 : f32
    %76 = vector.broadcast %cst_54 : f32 to vector<32x256xf32>
    %77 = arith.cmpf oge, %75, %76 : vector<32x256xf32>
    %cst_55 = arith.constant 2.000000e-01 : f32
    %78 = vector.broadcast %cst_55 : f32 to vector<32x256xf32>
    %79 = arith.mulf %78, %75 : vector<32x256xf32>
    %80 = arith.select %77, %75, %79 : vector<32x256xi1>, vector<32x256xf32>
    %cst_56 = arith.constant 1.41421354 : f32
    %81 = vector.broadcast %cst_56 : f32 to vector<32x256xf32>
    %82 = arith.mulf %80, %81 : vector<32x256xf32>
    %c0_57 = arith.constant 0 : index
    %c0_58 = arith.constant 0 : index
    %83 = vector.load %arg13[%c0_57, %c0_58] : memref<3x32xf32, #tpu.memory_space<vmem>>, vector<3x32xf32>
    %cst_59 = arith.constant dense<0.000000e+00> : vector<3x256xf32>
    %84 = tpu.matmul %83, %82, %cst_59 {dimension_numbers = #tpu.dot_dimension_numbers<[1], [0], [0], [1], [0, 0, 1, 1], [], []>} : vector<3x32xf32>, vector<32x256xf32>, vector<3x256xf32> -> vector<3x256xf32>
    %c0_60 = arith.constant 0 : index
    %c0_61 = arith.constant 0 : index
    %85 = vector.load %arg14[%c0_60, %c0_61] : memref<3x1xf32, #tpu.memory_space<vmem>>, vector<3x1xf32>
    %86 = vector.broadcast %85 : vector<3x1xf32> to vector<3x256xf32>
    %87 = arith.addf %84, %86 : vector<3x256xf32>
    %c0_62 = arith.constant 0 : index
    %c0_63 = arith.constant 0 : index
    %c0_64 = arith.constant 0 : index
    %88 = vector.load %arg3[%c0_62, %c0_63, %c0_64] : memref<1x1x256xf32, #tpu.memory_space<vmem>>, vector<1x1x256xf32>
    %89 = vector.shape_cast %88 : vector<1x1x256xf32> to vector<1x256xf32>
    %90 = vector.broadcast %89 : vector<1x256xf32> to vector<3x256xf32>
    %91 = arith.mulf %87, %90 : vector<3x256xf32>
    %c0_65 = arith.constant 0 : index
    %c0_66 = arith.constant 0 : index
    %c0_67 = arith.constant 0 : index
    %92 = vector.load %arg4[%c0_65, %c0_66, %c0_67] : memref<1x3x256xf32, #tpu.memory_space<vmem>>, vector<1x3x256xf32>
    %93 = vector.shape_cast %92 : vector<1x3x256xf32> to vector<3x256xf32>
    %cst_68 = arith.constant 1.000000e+00 : f32
    %94 = vector.broadcast %cst_68 : f32 to vector<1x256xf32>
    %95 = arith.subf %94, %89 : vector<1x256xf32>
    %96 = vector.broadcast %95 : vector<1x256xf32> to vector<3x256xf32>
    %97 = arith.mulf %93, %96 : vector<3x256xf32>
    %98 = arith.addf %91, %97 : vector<3x256xf32>
    %c0_69 = arith.constant 0 : index
    %c0_70 = arith.constant 0 : index
    %c0_71 = arith.constant 0 : index
    %99 = vector.load %arg15[%c0_69, %c0_70, %c0_71] : memref<1x3x256xf32, #tpu.memory_space<vmem>>, vector<1x3x256xf32>
    %100 = vector.shape_cast %99 : vector<1x3x256xf32> to vector<3x256xf32>
    %101 = vector.shape_cast %98 : vector<3x256xf32> to vector<1x3x256xf32>
    tpu.vector_store %arg15[%c0_69, %c0_70, %c0_71], %101 {strides = array<i32>} : memref<1x3x256xf32, #tpu.memory_space<vmem>>, vector<1x3x256xf32>,
    return
  }
  func.func @transform_0(%arg0: i32) -> (i32, i32, i32) {
    %c0_i32 = arith.constant 0 : i32
    %c0_i32_0 = arith.constant 0 : i32
    %c0_i32_1 = arith.constant 0 : i32
    return %arg0, %c0_i32, %c0_i32_0 : i32, i32, i32
  }
  func.func @transform_1(%arg0: i32) -> (i32, i32, i32) {
    %c0_i32 = arith.constant 0 : i32
    %c0_i32_0 = arith.constant 0 : i32
    %c0_i32_1 = arith.constant 0 : i32
    return %arg0, %c0_i32, %c0_i32_0 : i32, i32, i32
  }
  func.func @transform_2(%arg0: i32) -> (i32, i32, i32) {
    %c0_i32 = arith.constant 0 : i32
    %c0_i32_0 = arith.constant 0 : i32
    %c0_i32_1 = arith.constant 0 : i32
    return %arg0, %c0_i32, %c0_i32_0 : i32, i32, i32
  }
  func.func @transform_3(%arg0: i32) -> (i32, i32, i32) {
    %c0_i32 = arith.constant 0 : i32
    %c0_i32_0 = arith.constant 0 : i32
    %c0_i32_1 = arith.constant 0 : i32
    return %arg0, %c0_i32, %c0_i32_0 : i32, i32, i32
  }
  func.func @transform_4(%arg0: i32) -> (i32, i32) {
    %c0_i32 = arith.constant 0 : i32
    %c0_i32_0 = arith.constant 0 : i32
    %c0_i32_1 = arith.constant 0 : i32
    return %c0_i32, %c0_i32_0 : i32, i32
  }
  func.func @transform_5(%arg0: i32) -> (i32, i32) {
    %c0_i32 = arith.constant 0 : i32
    %c0_i32_0 = arith.constant 0 : i32
    %c0_i32_1 = arith.constant 0 : i32
    return %c0_i32, %c0_i32_0 : i32, i32
  }
  func.func @transform_6(%arg0: i32) -> (i32, i32) {
    %c0_i32 = arith.constant 0 : i32
    %c0_i32_0 = arith.constant 0 : i32
    %c0_i32_1 = arith.constant 0 : i32
    return %c0_i32, %c0_i32_0 : i32, i32
  }
  func.func @transform_7(%arg0: i32) -> (i32, i32) {
    %c0_i32 = arith.constant 0 : i32
    %c0_i32_0 = arith.constant 0 : i32
    %c0_i32_1 = arith.constant 0 : i32
    return %c0_i32, %c0_i32_0 : i32, i32
  }
  func.func @transform_8(%arg0: i32) -> (i32, i32, i32) {
    %c0_i32 = arith.constant 0 : i32
    %c0_i32_0 = arith.constant 0 : i32
    %c0_i32_1 = arith.constant 0 : i32
    %c0_i32_2 = arith.constant 0 : i32
    return %c0_i32, %c0_i32_0, %c0_i32_1 : i32, i32, i32
  }
  func.func @transform_9(%arg0: i32) -> (i32, i32, i32) {
    %c0_i32 = arith.constant 0 : i32
    %c0_i32_0 = arith.constant 0 : i32
    %c0_i32_1 = arith.constant 0 : i32
    %c0_i32_2 = arith.constant 0 : i32
    return %c0_i32, %c0_i32_0, %c0_i32_1 : i32, i32, i32
  }
  func.func @transform_10(%arg0: i32) -> (i32, i32, i32) {
    %c0_i32 = arith.constant 0 : i32
    %c0_i32_0 = arith.constant 0 : i32
    %c0_i32_1 = arith.constant 0 : i32
    %c0_i32_2 = arith.constant 0 : i32
    return %c0_i32, %c0_i32_0, %c0_i32_1 : i32, i32, i32
  }
  func.func @transform_11(%arg0: i32) -> (i32, i32, i32) {
    %c0_i32 = arith.constant 0 : i32
    %c0_i32_0 = arith.constant 0 : i32
    %c0_i32_1 = arith.constant 0 : i32
    %c0_i32_2 = arith.constant 0 : i32
    return %c0_i32, %c0_i32_0, %c0_i32_1 : i32, i32, i32
  }
  func.func @transform_12(%arg0: i32) -> (i32, i32) {
    %c0_i32 = arith.constant 0 : i32
    %c0_i32_0 = arith.constant 0 : i32
    %c0_i32_1 = arith.constant 0 : i32
    return %c0_i32, %c0_i32_0 : i32, i32
  }
  func.func @transform_13(%arg0: i32) -> (i32, i32) {
    %c0_i32 = arith.constant 0 : i32
    %c0_i32_0 = arith.constant 0 : i32
    %c0_i32_1 = arith.constant 0 : i32
    return %c0_i32, %c0_i32_0 : i32, i32
  }
  func.func @transform_14(%arg0: i32) -> (i32, i32, i32) {
    %c0_i32 = arith.constant 0 : i32
    %c0_i32_0 = arith.constant 0 : i32
    %c0_i32_1 = arith.constant 0 : i32
    return %arg0, %c0_i32, %c0_i32_0 : i32, i32, i32
  }
}

</mosaic_0001>

<llo_original>
// kernel: align_model_forward.1
$region0: #{align_model_forward.1}
  #allocation0 [shape = 'u32[]', space=smem, size = 0x4, offset = 0x4, fixed_abs, tag = 'smem constant byte address 0x4 - core index']
  #allocation1 [shape = 'u32[144,128]{1,0:T(1,128)}', space=vmem, size = 0x12000, scoped, tag = 'internal scratch']
  %s0 = inlined_call_operand.vmem [shape: f32[2,256,32], index: 0, kind: input, shape index: {}]
  %s1 = inlined_call_operand.vmem [shape: f32[2,3,256], index: 1, kind: input, shape index: {}]
  %s2 = inlined_call_operand.vmem [shape: f32[2,1,256], index: 2, kind: input, shape index: {}]
  %s3 = inlined_call_operand.vmem [shape: f32[2,3,256], index: 3, kind: input, shape index: {}]
  %s4 = inlined_call_operand.vmem [shape: f32[32,32], index: 4, kind: input, shape index: {}]
  %s5 = inlined_call_operand.vmem [shape: f32[32,256], index: 5, kind: input, shape index: {}]
  %s6 = inlined_call_operand.vmem [shape: f32[1,256], index: 6, kind: input, shape index: {}]
  %s7 = inlined_call_operand.vmem [shape: f32[32,3], index: 7, kind: input, shape index: {}]
  %s8 = inlined_call_operand.vmem [shape: f32[2,32,32], index: 8, kind: input, shape index: {}]
  %s9 = inlined_call_operand.vmem [shape: f32[2,1,32], index: 9, kind: input, shape index: {}]
  %s10 = inlined_call_operand.vmem [shape: f32[2,32,32], index: 10, kind: input, shape index: {}]
  %s11 = inlined_call_operand.vmem [shape: f32[2,32,1], index: 11, kind: input, shape index: {}]
  %s12 = inlined_call_operand.vmem [shape: f32[3,32], index: 12, kind: input, shape index: {}]
  %s13 = inlined_call_operand.vmem [shape: f32[3,1], index: 13, kind: input, shape index: {}]
  %s14 = inlined_call_operand.vmem [shape: f32[2,3,256], index: 14, kind: output, shape index: {}]
  %s15 = sld [smem:[#allocation0]]
  $region89: #{align_model_forward.1} parent=0
    _
  %s17 = ssub.s32 1, %s15
  %s18 = scalar_select 0, %s17, %s15
  loop: start=0, step=1, limit=4
  $region2: #{align_model_forward.1} parent=0 // loop_pre_header
    _
  $region3: #{align_model_forward.1} parent=0 // loop_header
    %s20 = sphi 0, %s24
    %p21 = scmp.ge.s32.totalorder %s20, 4
    %s30 = sphi 0, %s32
    %s33 = sphi 0, %s30
    %s34 = sphi 0, %s33
    %s50 = sphi 0, %s34
    %s56 = sphi 0, %s58
    %s59 = sphi 0, %s56
    %s60 = sphi 0, %s59
    %s76 = sphi 0, %s60
    %s82 = sphi 0, %s84
    %s85 = sphi 0, %s82
    %s86 = sphi 0, %s85
    %s102 = sphi 0, %s86
    %s108 = sphi 0, %s110
    %s111 = sphi 0, %s108
    %s112 = sphi 0, %s111
    %s128 = sphi 0, %s112
    %s132 = sphi 0, %s132
    %s134 = sphi 0, %s132
    %s135 = sphi 0, %s134
    %s149 = sphi 0, %s135
    %s153 = sphi 0, %s153
    %s155 = sphi 0, %s153
    %s156 = sphi 0, %s155
    %s170 = sphi 0, %s156
    %s174 = sphi 0, %s174
    %s176 = sphi 0, %s174
    %s177 = sphi 0, %s176
    %s191 = sphi 0, %s177
    %s195 = sphi 0, %s195
    %s197 = sphi 0, %s195
    %s198 = sphi 0, %s197
    %s212 = sphi 0, %s198
    %s216 = sphi 0, %s216
    %s218 = sphi 0, %s216
    %s219 = sphi 0, %s218
    %s233 = sphi 0, %s219
    %s237 = sphi 0, %s237
    %s239 = sphi 0, %s237
    %s240 = sphi 0, %s239
    %s254 = sphi 0, %s240
    %s258 = sphi 0, %s258
    %s260 = sphi 0, %s258
    %s261 = sphi 0, %s260
    %s275 = sphi 0, %s261
    %s279 = sphi 0, %s279
    %s281 = sphi 0, %s279
    %s282 = sphi 0, %s281
    %s296 = sphi 0, %s282
    %s300 = sphi 0, %s300
    %s302 = sphi 0, %s300
    %s303 = sphi 0, %s302
    %s317 = sphi 0, %s303
    %s321 = sphi 0, %s321
    %s323 = sphi 0, %s321
    %s324 = sphi 0, %s323
    %s338 = sphi 0, %s324
    %s344 = sphi 0, %s346
    %s347 = sphi 0, %s344
    %s348 = sphi 0, %s347
    %s364 = sphi 0, %s348
  $region4: #{align_model_forward.1} parent=0 // loop_header_branch
    %23 = sbr.rel (%p21) target = $region8
  $region5: #{align_model_forward.1} parent=0 // loop_body
    %s25 = ssub.s32 %s20, 1
    %s26 = ssub.s32 %s20, 2
    %s27 = sadd.s32 %s20, 1
    %s28 = ssub.s32 %s20, %s27
    %p29 = scmp.eq.s32.totalorder %s28, 0
    %s31 = sadd.s32 %s30, 1
    %s32 = scalar_select %p29, %s30, %s31
    %p35 = pneg %p29
    %p36 = scmp.eq.s32.totalorder %s20, 1
    %p37 = por %p35, %p36
    %p38 = scmp.ne.s32.totalorder %s30, %s33
    %p39 = scmp.eq.s32.totalorder %s20, 0
    %p40 = por %p38, %p39
    %p41 = scmp.ne.s32.totalorder %s30, %s33
    %p42 = scmp.eq.s32.totalorder %s25, 1
    %p43 = por %p41, %p42
    %p44 = scmp.ne.s32.totalorder %s33, %s34
    %p45 = scmp.eq.s32.totalorder %s25, 0
    %p46 = por %p44, %p45
    %p47 = scmp.ne.s32.totalorder %s33, %s34
    %p48 = scmp.eq.s32.totalorder %s26, 1
    %p49 = por %p47, %p48
    %p51 = scmp.ne.s32.totalorder %s34, %s50
    %p52 = scmp.eq.s32.totalorder %s26, 0
    %p53 = por %p51, %p52
    %s54 = ssub.s32 %s20, %s27
    %p55 = scmp.eq.s32.totalorder %s54, 0
    %s57 = sadd.s32 %s56, 1
    %s58 = scalar_select %p55, %s56, %s57
    %p61 = pneg %p55
    %p62 = scmp.eq.s32.totalorder %s20, 1
    %p63 = por %p61, %p62
    %p64 = scmp.ne.s32.totalorder %s56, %s59
    %p65 = scmp.eq.s32.totalorder %s20, 0
    %p66 = por %p64, %p65
    %p67 = scmp.ne.s32.totalorder %s56, %s59
    %p68 = scmp.eq.s32.totalorder %s25, 1
    %p69 = por %p67, %p68
    %p70 = scmp.ne.s32.totalorder %s59, %s60
    %p71 = scmp.eq.s32.totalorder %s25, 0
    %p72 = por %p70, %p71
    %p73 = scmp.ne.s32.totalorder %s59, %s60
    %p74 = scmp.eq.s32.totalorder %s26, 1
    %p75 = por %p73, %p74
    %p77 = scmp.ne.s32.totalorder %s60, %s76
    %p78 = scmp.eq.s32.totalorder %s26, 0
    %p79 = por %p77, %p78
    %s80 = ssub.s32 %s20, %s27
    %p81 = scmp.eq.s32.totalorder %s80, 0
    %s83 = sadd.s32 %s82, 1
    %s84 = scalar_select %p81, %s82, %s83
    %p87 = pneg %p81
    %p88 = scmp.eq.s32.totalorder %s20, 1
    %p89 = por %p87, %p88
    %p90 = scmp.ne.s32.totalorder %s82, %s85
    %p91 = scmp.eq.s32.totalorder %s20, 0
    %p92 = por %p90, %p91
    %p93 = scmp.ne.s32.totalorder %s82, %s85
    %p94 = scmp.eq.s32.totalorder %s25, 1
    %p95 = por %p93, %p94
    %p96 = scmp.ne.s32.totalorder %s85, %s86
    %p97 = scmp.eq.s32.totalorder %s25, 0
    %p98 = por %p96, %p97
    %p99 = scmp.ne.s32.totalorder %s85, %s86
    %p100 = scmp.eq.s32.totalorder %s26, 1
    %p101 = por %p99, %p100
    %p103 = scmp.ne.s32.totalorder %s86, %s102
    %p104 = scmp.eq.s32.totalorder %s26, 0
    %p105 = por %p103, %p104
    %s106 = ssub.s32 %s20, %s27
    %p107 = scmp.eq.s32.totalorder %s106, 0
    %s109 = sadd.s32 %s108, 1
    %s110 = scalar_select %p107, %s108, %s109
    %p113 = pneg %p107
    %p114 = scmp.eq.s32.totalorder %s20, 1
    %p115 = por %p113, %p114
    %p116 = scmp.ne.s32.totalorder %s108, %s111
    %p117 = scmp.eq.s32.totalorder %s20, 0
    %p118 = por %p116, %p117
    %p119 = scmp.ne.s32.totalorder %s108, %s111
    %p120 = scmp.eq.s32.totalorder %s25, 1
    %p121 = por %p119, %p120
    %p122 = scmp.ne.s32.totalorder %s111, %s112
    %p123 = scmp.eq.s32.totalorder %s25, 0
    %p124 = por %p122, %p123
    %p125 = scmp.ne.s32.totalorder %s111, %s112
    %p126 = scmp.eq.s32.totalorder %s26, 1
    %p127 = por %p125, %p126
    %p129 = scmp.ne.s32.totalorder %s112, %s128
    %p130 = scmp.eq.s32.totalorder %s26, 0
    %p131 = por %p129, %p130
    %s133 = sadd.s32 %s132, 1
    %p136 = scmp.eq.s32.totalorder %s20, 1
    %p137 = scmp.ne.s32.totalorder %s132, %s134
    %p138 = scmp.eq.s32.totalorder %s20, 0
    %p139 = por %p137, %p138
    %p140 = scmp.ne.s32.totalorder %s132, %s134
    %p141 = scmp.eq.s32.totalorder %s25, 1
    %p142 = por %p140, %p141
    %p143 = scmp.ne.s32.totalorder %s134, %s135
    %p144 = scmp.eq.s32.totalorder %s25, 0
    %p145 = por %p143, %p144
    %p146 = scmp.ne.s32.totalorder %s134, %s135
    %p147 = scmp.eq.s32.totalorder %s26, 1
    %p148 = por %p146, %p147
    %p150 = scmp.ne.s32.totalorder %s135, %s149
    %p151 = scmp.eq.s32.totalorder %s26, 0
    %p152 = por %p150, %p151
    %s154 = sadd.s32 %s153, 1
    %p157 = scmp.eq.s32.totalorder %s20, 1
    %p158 = scmp.ne.s32.totalorder %s153, %s155
    %p159 = scmp.eq.s32.totalorder %s20, 0
    %p160 = por %p158, %p159
    %p161 = scmp.ne.s32.totalorder %s153, %s155
    %p162 = scmp.eq.s32.totalorder %s25, 1
    %p163 = por %p161, %p162
    %p164 = scmp.ne.s32.totalorder %s155, %s156
    %p165 = scmp.eq.s32.totalorder %s25, 0
    %p166 = por %p164, %p165
    %p167 = scmp.ne.s32.totalorder %s155, %s156
    %p168 = scmp.eq.s32.totalorder %s26, 1
    %p169 = por %p167, %p168
    %p171 = scmp.ne.s32.totalorder %s156, %s170
    %p172 = scmp.eq.s32.totalorder %s26, 0
    %p173 = por %p171, %p172
    %s175 = sadd.s32 %s174, 1
    %p178 = scmp.eq.s32.totalorder %s20, 1
    %p179 = scmp.ne.s32.totalorder %s174, %s176
    %p180 = scmp.eq.s32.totalorder %s20, 0
    %p181 = por %p179, %p180
    %p182 = scmp.ne.s32.totalorder %s174, %s176
    %p183 = scmp.eq.s32.totalorder %s25, 1
    %p184 = por %p182, %p183
    %p185 = scmp.ne.s32.totalorder %s176, %s177
    %p186 = scmp.eq.s32.totalorder %s25, 0
    %p187 = por %p185, %p186
    %p188 = scmp.ne.s32.totalorder %s176, %s177
    %p189 = scmp.eq.s32.totalorder %s26, 1
    %p190 = por %p188, %p189
    %p192 = scmp.ne.s32.totalorder %s177, %s191
    %p193 = scmp.eq.s32.totalorder %s26, 0
    %p194 = por %p192, %p193
    %s196 = sadd.s32 %s195, 1
    %p199 = scmp.eq.s32.totalorder %s20, 1
    %p200 = scmp.ne.s32.totalorder %s195, %s197
    %p201 = scmp.eq.s32.totalorder %s20, 0
    %p202 = por %p200, %p201
    %p203 = scmp.ne.s32.totalorder %s195, %s197
    %p204 = scmp.eq.s32.totalorder %s25, 1
    %p205 = por %p203, %p204
    %p206 = scmp.ne.s32.totalorder %s197, %s198
    %p207 = scmp.eq.s32.totalorder %s25, 0
    %p208 = por %p206, %p207
    %p209 = scmp.ne.s32.totalorder %s197, %s198
    %p210 = scmp.eq.s32.totalorder %s26, 1
    %p211 = por %p209, %p210
    %p213 = scmp.ne.s32.totalorder %s198, %s212
    %p214 = scmp.eq.s32.totalorder %s26, 0
    %p215 = por %p213, %p214
    %s217 = sadd.s32 %s216, 1
    %p220 = scmp.eq.s32.totalorder %s20, 1
    %p221 = scmp.ne.s32.totalorder %s216, %s218
    %p222 = scmp.eq.s32.totalorder %s20, 0
    %p223 = por %p221, %p222
    %p224 = scmp.ne.s32.totalorder %s216, %s218
    %p225 = scmp.eq.s32.totalorder %s25, 1
    %p226 = por %p224, %p225
    %p227 = scmp.ne.s32.totalorder %s218, %s219
    %p228 = scmp.eq.s32.totalorder %s25, 0
    %p229 = por %p227, %p228
    %p230 = scmp.ne.s32.totalorder %s218, %s219
    %p231 = scmp.eq.s32.totalorder %s26, 1
    %p232 = por %p230, %p231
    %p234 = scmp.ne.s32.totalorder %s219, %s233
    %p235 = scmp.eq.s32.totalorder %s26, 0
    %p236 = por %p234, %p235
    %s238 = sadd.s32 %s237, 1
    %p241 = scmp.eq.s32.totalorder %s20, 1
    %p242 = scmp.ne.s32.totalorder %s237, %s239
    %p243 = scmp.eq.s32.totalorder %s20, 0
    %p244 = por %p242, %p243
    %p245 = scmp.ne.s32.totalorder %s237, %s239
    %p246 = scmp.eq.s32.totalorder %s25, 1
    %p247 = por %p245, %p246
    %p248 = scmp.ne.s32.totalorder %s239, %s240
    %p249 = scmp.eq.s32.totalorder %s25, 0
    %p250 = por %p248, %p249
    %p251 = scmp.ne.s32.totalorder %s239, %s240
    %p252 = scmp.eq.s32.totalorder %s26, 1
    %p253 = por %p251, %p252
    %p255 = scmp.ne.s32.totalorder %s240, %s254
    %p256 = scmp.eq.s32.totalorder %s26, 0
    %p257 = por %p255, %p256
    %s259 = sadd.s32 %s258, 1
    %p262 = scmp.eq.s32.totalorder %s20, 1
    %p263 = scmp.ne.s32.totalorder %s258, %s260
    %p264 = scmp.eq.s32.totalorder %s20, 0
    %p265 = por %p263, %p264
    %p266 = scmp.ne.s32.totalorder %s258, %s260
    %p267 = scmp.eq.s32.totalorder %s25, 1
    %p268 = por %p266, %p267
    %p269 = scmp.ne.s32.totalorder %s260, %s261
    %p270 = scmp.eq.s32.totalorder %s25, 0
    %p271 = por %p269, %p270
    %p272 = scmp.ne.s32.totalorder %s260, %s261
    %p273 = scmp.eq.s32.totalorder %s26, 1
    %p274 = por %p272, %p273
    %p276 = scmp.ne.s32.totalorder %s261, %s275
    %p277 = scmp.eq.s32.totalorder %s26, 0
    %p278 = por %p276, %p277
    %s280 = sadd.s32 %s279, 1
    %p283 = scmp.eq.s32.totalorder %s20, 1
    %p284 = scmp.ne.s32.totalorder %s279, %s281
    %p285 = scmp.eq.s32.totalorder %s20, 0
    %p286 = por %p284, %p285
    %p287 = scmp.ne.s32.totalorder %s279, %s281
    %p288 = scmp.eq.s32.totalorder %s25, 1
    %p289 = por %p287, %p288
    %p290 = scmp.ne.s32.totalorder %s281, %s282
    %p291 = scmp.eq.s32.totalorder %s25, 0
    %p292 = por %p290, %p291
    %p293 = scmp.ne.s32.totalorder %s281, %s282
    %p294 = scmp.eq.s32.totalorder %s26, 1
    %p295 = por %p293, %p294
    %p297 = scmp.ne.s32.totalorder %s282, %s296
    %p298 = scmp.eq.s32.totalorder %s26, 0
    %p299 = por %p297, %p298
    %s301 = sadd.s32 %s300, 1
    %p304 = scmp.eq.s32.totalorder %s20, 1
    %p305 = scmp.ne.s32.totalorder %s300, %s302
    %p306 = scmp.eq.s32.totalorder %s20, 0
    %p307 = por %p305, %p306
    %p308 = scmp.ne.s32.totalorder %s300, %s302
    %p309 = scmp.eq.s32.totalorder %s25, 1
    %p310 = por %p308, %p309
    %p311 = scmp.ne.s32.totalorder %s302, %s303
    %p312 = scmp.eq.s32.totalorder %s25, 0
    %p313 = por %p311, %p312
    %p314 = scmp.ne.s32.totalorder %s302, %s303
    %p315 = scmp.eq.s32.totalorder %s26, 1
    %p316 = por %p314, %p315
    %p318 = scmp.ne.s32.totalorder %s303, %s317
    %p319 = scmp.eq.s32.totalorder %s26, 0
    %p320 = por %p318, %p319
    %s322 = sadd.s32 %s321, 1
    %p325 = scmp.eq.s32.totalorder %s20, 1
    %p326 = scmp.ne.s32.totalorder %s321, %s323
    %p327 = scmp.eq.s32.totalorder %s20, 0
    %p328 = por %p326, %p327
    %p329 = scmp.ne.s32.totalorder %s321, %s323
    %p330 = scmp.eq.s32.totalorder %s25, 1
    %p331 = por %p329, %p330
    %p332 = scmp.ne.s32.totalorder %s323, %s324
    %p333 = scmp.eq.s32.totalorder %s25, 0
    %p334 = por %p332, %p333
    %p335 = scmp.ne.s32.totalorder %s323, %s324
    %p336 = scmp.eq.s32.totalorder %s26, 1
    %p337 = por %p335, %p336
    %p339 = scmp.ne.s32.totalorder %s324, %s338
    %p340 = scmp.eq.s32.totalorder %s26, 0
    %p341 = por %p339, %p340
    %s342 = ssub.s32 %s20, %s27
    %p343 = scmp.eq.s32.totalorder %s342, 0
    %s345 = sadd.s32 %s344, 1
    %s346 = scalar_select %p343, %s344, %s345
    %p349 = pneg %p343
    %p350 = scmp.eq.s32.totalorder %s20, 1
    %p351 = por %p349, %p350
    %p352 = scmp.ne.s32.totalorder %s344, %s347
    %p353 = scmp.eq.s32.totalorder %s20, 0
    %p354 = por %p352, %p353
    %p355 = scmp.ne.s32.totalorder %s344, %s347
    %p356 = scmp.eq.s32.totalorder %s25, 1
    %p357 = por %p355, %p356
    %p358 = scmp.ne.s32.totalorder %s347, %s348
    %p359 = scmp.eq.s32.totalorder %s25, 0
    %p360 = por %p358, %p359
    %p361 = scmp.ne.s32.totalorder %s347, %s348
    %p362 = scmp.eq.s32.totalorder %s26, 1
    %p363 = por %p361, %p362
    %p365 = scmp.ne.s32.totalorder %s348, %s364
    %p366 = scmp.eq.s32.totalorder %s26, 0
    %p367 = por %p365, %p366
    %p368 = scmp.le.s32.totalorder 1, %s20
    %p369 = scmp.lt.s32.totalorder %s20, 3
    %p370 = pnand %p368, %p369
    %p371 = pneg %p370
    // Predicated region
    $region9: #{align_model_forward.1} parent=5 // pred_check
      _
    $region10: #{align_model_forward.1} parent=5 // pred_check_branch
      %373 = sbr.rel (%p370) target = $region12
    $region11: #{align_model_forward.1} parent=5 // pred_region
      %s374 = ssub.s32 %s20, 1
      // Predicated region
      $region13: #{align_model_forward.1} parent=11 // pred_check
        %p375 = pneg %p145
      $region14: #{align_model_forward.1} parent=11 // pred_check_branch
        %377 = sbr.rel (%p375) target = $region16
      $region15: #{align_model_forward.1} parent=11 // pred_region
        _
      $region16: #{align_model_forward.1} parent=11 // pred_fallthru
        _
      // Predicated region
      $region17: #{align_model_forward.1} parent=11 // pred_check
        %p378 = pneg %p166
      $region18: #{align_model_forward.1} parent=11 // pred_check_branch
        %380 = sbr.rel (%p378) target = $region20
      $region19: #{align_model_forward.1} parent=11 // pred_region
        _
      $region20: #{align_model_forward.1} parent=11 // pred_fallthru
        _
      // Predicated region
      $region21: #{align_model_forward.1} parent=11 // pred_check
        %p381 = pneg %p187
      $region22: #{align_model_forward.1} parent=11 // pred_check_branch
        %383 = sbr.rel (%p381) target = $region24
      $region23: #{align_model_forward.1} parent=11 // pred_region
        _
      $region24: #{align_model_forward.1} parent=11 // pred_fallthru
        _
      // Predicated region
      $region25: #{align_model_forward.1} parent=11 // pred_check
        %p384 = pneg %p208
      $region26: #{align_model_forward.1} parent=11 // pred_check_branch
        %386 = sbr.rel (%p384) target = $region28
      $region27: #{align_model_forward.1} parent=11 // pred_region
        _
      $region28: #{align_model_forward.1} parent=11 // pred_fallthru
        _
      // Predicated region
      $region29: #{align_model_forward.1} parent=11 // pred_check
        %p387 = pneg %p229
      $region30: #{align_model_forward.1} parent=11 // pred_check_branch
        %389 = sbr.rel (%p387) target = $region32
      $region31: #{align_model_forward.1} parent=11 // pred_region
        _
      $region32: #{align_model_forward.1} parent=11 // pred_fallthru
        _
      // Predicated region
      $region33: #{align_model_forward.1} parent=11 // pred_check
        %p390 = pneg %p250
      $region34: #{align_model_forward.1} parent=11 // pred_check_branch
        %392 = sbr.rel (%p390) target = $region36
      $region35: #{align_model_forward.1} parent=11 // pred_region
        _
      $region36: #{align_model_forward.1} parent=11 // pred_fallthru
        _
      // Predicated region
      $region37: #{align_model_forward.1} parent=11 // pred_check
        %p393 = pneg %p271
      $region38: #{align_model_forward.1} parent=11 // pred_check_branch
        %395 = sbr.rel (%p393) target = $region40
      $region39: #{align_model_forward.1} parent=11 // pred_region
        _
      $region40: #{align_model_forward.1} parent=11 // pred_fallthru
        _
      // Predicated region
      $region41: #{align_model_forward.1} parent=11 // pred_check
        %p396 = pneg %p292
      $region42: #{align_model_forward.1} parent=11 // pred_check_branch
        %398 = sbr.rel (%p396) target = $region44
      $region43: #{align_model_forward.1} parent=11 // pred_region
        _
      $region44: #{align_model_forward.1} parent=11 // pred_fallthru
        _
      // Predicated region
      $region45: #{align_model_forward.1} parent=11 // pred_check
        %p399 = pneg %p313
      $region46: #{align_model_forward.1} parent=11 // pred_check_branch
        %401 = sbr.rel (%p399) target = $region48
      $region47: #{align_model_forward.1} parent=11 // pred_region
        _
      $region48: #{align_model_forward.1} parent=11 // pred_fallthru
        _
      // Predicated region
      $region49: #{align_model_forward.1} parent=11 // pred_check
        %p402 = pneg %p334
      $region50: #{align_model_forward.1} parent=11 // pred_check_branch
        %404 = sbr.rel (%p402) target = $region52
      $region51: #{align_model_forward.1} parent=11 // pred_region
        _
      $region52: #{align_model_forward.1} parent=11 // pred_fallthru
        _
    $region12: #{align_model_forward.1} parent=5 // pred_fallthru
      _
    %p405 = scmp.lt.s32.totalorder %s20, 2
    // Predicated region
    $region53: #{align_model_forward.1} parent=5 // pred_check
      %p406 = pneg %p405
    $region54: #{align_model_forward.1} parent=5 // pred_check_branch
      %408 = sbr.rel (%p406) target = $region56
    $region55: #{align_model_forward.1} parent=5 // pred_region
      // Predicated region
      $region57: #{align_model_forward.1} parent=55 // pred_check
        %p409 = pneg %p40
      $region58: #{align_model_forward.1} parent=55 // pred_check_branch
        %411 = sbr.rel (%p409) target = $region60
      $region59: #{align_model_forward.1} parent=55 // pred_region
        %p412 = scmp.lt.s32.totalorder %s20, 1
        %s413 = scalar_select %p412, %s20, 1
        %s414 = smul.addr %s413, 32
        %s415 = smul.addr %s414, 8
        %s416 = scalar_lea.vmem %s0, %s415
      $region60: #{align_model_forward.1} parent=55 // pred_fallthru
        _
      // Predicated region
      $region61: #{align_model_forward.1} parent=55 // pred_check
        %p417 = pneg %p66
      $region62: #{align_model_forward.1} parent=55 // pred_check_branch
        %419 = sbr.rel (%p417) target = $region64
      $region63: #{align_model_forward.1} parent=55 // pred_region
        %p420 = scmp.lt.s32.totalorder %s20, 1
        %s421 = scalar_select %p420, %s20, 1
        %s422 = smul.addr %s421, 2
        %s423 = smul.addr %s422, 4
        %s424 = scalar_lea.vmem %s1, %s423
      $region64: #{align_model_forward.1} parent=55 // pred_fallthru
        _
      // Predicated region
      $region65: #{align_model_forward.1} parent=55 // pred_check
        %p425 = pneg %p92
      $region66: #{align_model_forward.1} parent=55 // pred_check_branch
        %427 = sbr.rel (%p425) target = $region68
      $region67: #{align_model_forward.1} parent=55 // pred_region
        %p428 = scmp.lt.s32.totalorder %s20, 1
        %s429 = scalar_select %p428, %s20, 1
        %s430 = smul.addr %s429, 2
        %s431 = scalar_lea.vmem %s2, %s430
      $region68: #{align_model_forward.1} parent=55 // pred_fallthru
        _
      // Predicated region
      $region69: #{align_model_forward.1} parent=55 // pred_check
        %p432 = pneg %p118
      $region70: #{align_model_forward.1} parent=55 // pred_check_branch
        %434 = sbr.rel (%p432) target = $region72
      $region71: #{align_model_forward.1} parent=55 // pred_region
        %p435 = scmp.lt.s32.totalorder %s20, 1
        %s436 = scalar_select %p435, %s20, 1
        %s437 = smul.addr %s436, 2
        %s438 = smul.addr %s437, 4
        %s439 = scalar_lea.vmem %s3, %s438
      $region72: #{align_model_forward.1} parent=55 // pred_fallthru
        _
    $region56: #{align_model_forward.1} parent=5 // pred_fallthru
      _
    %p440 = scmp.le.s32.totalorder 1, %s20
    %p441 = scmp.lt.s32.totalorder %s20, 3
    %p442 = pnand %p440, %p441
    %p443 = pneg %p442
    // Predicated region
    $region73: #{align_model_forward.1} parent=5 // pred_check
      _
    $region74: #{align_model_forward.1} parent=5 // pred_check_branch
      %445 = sbr.rel (%p442) target = $region76
    $region75: #{align_model_forward.1} parent=5 // pred_region
      %s446 = ssub.s32 %s20, 1
      %p447 = scmp.lt.s32.totalorder %s25, 1
      %s448 = scalar_select %p447, %s25, 1
      %s449 = smul.addr %s448, 32
      %s450 = smul.addr %s449, 8
      %s451 = scalar_lea.vmem %s0, %s450
      %p452 = pneg %p46
      %p453 = pneg %p43
      %p454 = scmp.lt.s32.totalorder %s25, 1
      %s455 = scalar_select %p454, %s25, 1
      %s456 = smul.addr %s455, 2
      %s457 = smul.addr %s456, 4
      %s458 = scalar_lea.vmem %s1, %s457
      %p459 = pneg %p72
      %p460 = pneg %p69
      %p461 = scmp.lt.s32.totalorder %s25, 1
      %s462 = scalar_select %p461, %s25, 1
      %s463 = smul.addr %s462, 2
      %s464 = scalar_lea.vmem %s2, %s463
      %p465 = pneg %p98
      %p466 = pneg %p95
      %p467 = scmp.lt.s32.totalorder %s25, 1
      %s468 = scalar_select %p467, %s25, 1
      %s469 = smul.addr %s468, 2
      %s470 = smul.addr %s469, 4
      %s471 = scalar_lea.vmem %s3, %s470
      %p472 = pneg %p124
      %p473 = pneg %p121
      %p474 = pneg %p145
      %p475 = pneg %p142
      %p476 = pneg %p166
      %p477 = pneg %p163
      %p478 = pneg %p187
      %p479 = pneg %p184
      %p480 = pneg %p208
      %p481 = pneg %p205
      %p482 = pneg %p229
      %p483 = pneg %p226
      %p484 = pneg %p250
      %p485 = pneg %p247
      %p486 = pneg %p271
      %p487 = pneg %p268
      %p488 = pneg %p292
      %p489 = pneg %p289
      %p490 = pneg %p313
      %p491 = pneg %p310
      %p492 = pneg %p334
      %p493 = pneg %p331
      %p494 = pneg %p360
      %p495 = pneg %p357
      %p496 = scmp.lt.s32.totalorder %s25, 1
      %s497 = scalar_select %p496, %s25, 1
      %s498 = smul.addr %s497, 2
      %s499 = smul.addr %s498, 4
      %s500 = scalar_lea.vmem %s14, %s499
      %p501 = scmp.lt.s32.totalorder %s25, 1
      %s502 = scalar_select %p501, %s25, 1
      %s503 = smul.addr %s502, 32
      %s504 = smul.addr %s503, 8
      %s505 = scalar_lea.vmem %s0, %s504
      %p506 = scmp.lt.s32.totalorder %s25, 1
      %s507 = scalar_select %p506, %s25, 1
      %s508 = smul.addr %s507, 2
      %s509 = smul.addr %s508, 4
      %s510 = scalar_lea.vmem %s1, %s509
      %p511 = scmp.lt.s32.totalorder %s25, 1
      %s512 = scalar_select %p511, %s25, 1
      %s513 = smul.addr %s512, 2
      %s514 = scalar_lea.vmem %s2, %s513
      %p515 = scmp.lt.s32.totalorder %s25, 1
      %s516 = scalar_select %p515, %s25, 1
      %s517 = smul.addr %s516, 2
      %s518 = smul.addr %s517, 4
      %s519 = scalar_lea.vmem %s3, %s518
      %p520 = scmp.lt.s32.totalorder %s25, 1
      %s521 = scalar_select %p520, %s25, 1
      %s522 = smul.addr %s521, 2
      %s523 = smul.addr %s522, 4
      %s524 = scalar_lea.vmem %s14, %s523
      %v525 = vld [vmem:[%s505] sm:$0xff]
      %v526 = vld [vmem:[%s505 + $0x8] sm:$0xff]
      %v527 = vld [vmem:[%s505 + $0x10] sm:$0xff]
      %v528 = vld [vmem:[%s505 + $0x18] sm:$0xff]
      %v529 = vld [vmem:[%s505 + $0x20] sm:$0xff]
      %v530 = vld [vmem:[%s505 + $0x28] sm:$0xff]
      %v531 = vld [vmem:[%s505 + $0x30] sm:$0xff]
      %v532 = vld [vmem:[%s505 + $0x38] sm:$0xff]
      %v533 = vld [vmem:[%s505 + $0x40] sm:$0xff]
      %v534 = vld [vmem:[%s505 + $0x48] sm:$0xff]
      %v535 = vld [vmem:[%s505 + $0x50] sm:$0xff]
      %v536 = vld [vmem:[%s505 + $0x58] sm:$0xff]
      %v537 = vld [vmem:[%s505 + $0x60] sm:$0xff]
      %v538 = vld [vmem:[%s505 + $0x68] sm:$0xff]
      %v539 = vld [vmem:[%s505 + $0x70] sm:$0xff]
      %v540 = vld [vmem:[%s505 + $0x78] sm:$0xff]
      %v541 = vld [vmem:[%s505 + $0x80] sm:$0xff]
      %v542 = vld [vmem:[%s505 + $0x88] sm:$0xff]
      %v543 = vld [vmem:[%s505 + $0x90] sm:$0xff]
      %v544 = vld [vmem:[%s505 + $0x98] sm:$0xff]
      %v545 = vld [vmem:[%s505 + $0xa0] sm:$0xff]
      %v546 = vld [vmem:[%s505 + $0xa8] sm:$0xff]
      %v547 = vld [vmem:[%s505 + $0xb0] sm:$0xff]
      %v548 = vld [vmem:[%s505 + $0xb8] sm:$0xff]
      %v549 = vld [vmem:[%s505 + $0xc0] sm:$0xff]
      %v550 = vld [vmem:[%s505 + $0xc8] sm:$0xff]
      %v551 = vld [vmem:[%s505 + $0xd0] sm:$0xff]
      %v552 = vld [vmem:[%s505 + $0xd8] sm:$0xff]
      %v553 = vld [vmem:[%s505 + $0xe0] sm:$0xff]
      %v554 = vld [vmem:[%s505 + $0xe8] sm:$0xff]
      %v555 = vld [vmem:[%s505 + $0xf0] sm:$0xff]
      %v556 = vld [vmem:[%s505 + $0xf8] sm:$0xff]
      %v557 = vld [vmem:[%s4] sm:$0xff]
      %v558 = vld [vmem:[%s4 + $0x8] sm:$0xff]
      %v559 = vld [vmem:[%s4 + $0x10] sm:$0xff]
      %v560 = vld [vmem:[%s4 + $0x18] sm:$0xff]
      %vm561 = vcmask 261120
      %v563 = vsel %vm561, %v525, 0
      %v566 = vsel %vm561, %v526, 0
      %v569 = vsel %vm561, %v527, 0
      %v572 = vsel %vm561, %v528, 0
      %v575 = vsel %vm561, %v529, 0
      %v578 = vsel %vm561, %v530, 0
      %v581 = vsel %vm561, %v531, 0
      %v584 = vsel %vm561, %v532, 0
      %v587 = vsel %vm561, %v533, 0
      %v590 = vsel %vm561, %v534, 0
      %v593 = vsel %vm561, %v535, 0
      %v596 = vsel %vm561, %v536, 0
      %v599 = vsel %vm561, %v537, 0
      %v602 = vsel %vm561, %v538, 0
      %v605 = vsel %vm561, %v539, 0
      %v608 = vsel %vm561, %v540, 0
      %v611 = vsel %vm561, %v541, 0
      %v614 = vsel %vm561, %v542, 0
      %v617 = vsel %vm561, %v543, 0
      %v620 = vsel %vm561, %v544, 0
      %v623 = vsel %vm561, %v545, 0
      %v626 = vsel %vm561, %v546, 0
      %v629 = vsel %vm561, %v547, 0
      %v632 = vsel %vm561, %v548, 0
      %v635 = vsel %vm561, %v549, 0
      %v638 = vsel %vm561, %v550, 0
      %v641 = vsel %vm561, %v551, 0
      %v644 = vsel %vm561, %v552, 0
      %v647 = vsel %vm561, %v553, 0
      %v650 = vsel %vm561, %v554, 0
      %v653 = vsel %vm561, %v555, 0
      %v656 = vsel %vm561, %v556, 0
      %658 = vmatprep.subr.mxu0 0.0
      %659 = vmatpush1.msra.mxu0 %v557
      %660 = vmatprep.subr.mxu0 0.0
      %661 = vmatpush1.msra.mxu0 %v558
      %662 = vmatprep.subr.mxu0 0.0
      %663 = vmatpush1.msra.mxu0 %v559
      %664 = vmatprep.subr.mxu0 0.0
      %665 = vmatpush1.msra.mxu0 %v560
      %666 = vmatprep.subr.mxu0 0.0
      %667 = vmatpush1.msra.mxu0 0.0
      %668 = vmatprep.subr.mxu0 0.0
      %669 = vmatpush1.msra.mxu0 0.0
      %670 = vmatprep.subr.mxu0 0.0
      %671 = vmatpush1.msra.mxu0 0.0
      %672 = vmatprep.subr.mxu0 0.0
      %673 = vmatpush1.msra.mxu0 0.0
      %674 = vmatprep.subr.mxu0 0.0
      %675 = vmatpush1.msra.mxu0 0.0
      %676 = vmatprep.subr.mxu0 0.0
      %677 = vmatpush1.msra.mxu0 0.0
      %678 = vmatprep.subr.mxu0 0.0
      %679 = vmatpush1.msra.mxu0 0.0
      %680 = vmatprep.subr.mxu0 0.0
      %681 = vmatpush1.msra.mxu0 0.0
      %682 = vmatprep.subr.mxu0 0.0
      %683 = vmatpush1.msra.mxu0 0.0
      %684 = vmatprep.subr.mxu0 0.0
      %685 = vmatpush1.msra.mxu0 0.0
      %686 = vmatprep.subr.mxu0 0.0
      %687 = vmatpush1.msra.mxu0 0.0
      %688 = vmatprep.subr.mxu0 0.0
      %689 = vmatpush1.msra.mxu0 0.0
      %690 = vmatprep.subr.mxu0 0.0
      %691 = vmatpush1.msra.mxu0 0.0
      %692 = vmatprep.subr.mxu0 0.0
      %693 = vmatpush1.msra.mxu0 0.0
      %694 = vmatprep.subr.mxu0 0.0
      %695 = vmatpush1.msra.mxu0 0.0
      %696 = vmatprep.subr.mxu0 0.0
      %697 = vmatpush1.msra.mxu0 0.0
      %698 = vmatprep.subr.mxu0 0.0
      %699 = vmatpush1.msra.mxu0 0.0
      %700 = vmatprep.subr.mxu0 0.0
      %701 = vmatpush1.msra.mxu0 0.0
      %702 = vmatprep.subr.mxu0 0.0
      %703 = vmatpush1.msra.mxu0 0.0
      %704 = vmatprep.subr.mxu0 0.0
      %705 = vmatpush1.msra.mxu0 0.0
      %706 = vmatprep.subr.mxu0 0.0
      %707 = vmatpush1.msra.mxu0 0.0
      %708 = vmatprep.subr.mxu0 0.0
      %709 = vmatpush1.msra.mxu0 0.0
      %710 = vmatprep.subr.mxu0 0.0
      %711 = vmatpush1.msra.mxu0 0.0
      %712 = vmatprep.subr.mxu0 0.0
      %713 = vmatpush1.msra.mxu0 0.0
      %714 = vmatprep.subr.mxu0 0.0
      %715 = vmatpush1.msra.mxu0 0.0
      %716 = vmatprep.subr.mxu0 0.0
      %717 = vmatpush1.msra.mxu0 0.0
      %718 = vmatprep.subr.mxu0 0.0
      %719 = vmatpush1.msra.mxu0 0.0
      %720 = vmatprep.subr.mxu0 0.0
      %721 = vmatpush1.msra.mxu0 0.0
      %722 = vmatprep.mubr.f32.mxu0 0.0
      %723 = vmatmul.mubr.f32.gmra.mrb[0].mxu0 %v563
      %v724 = vpop.f32.mrb[0].mxu0
      %v725 = vadd.f32 0.0, %v724
      %v726 = vpop.f32.mrb[0].mxu0
      %727 = vmatprep.mubr.f32.mxu0 0.0
      %728 = vmatmul.mubr.f32.gmra.mrb[0].mxu0 %v566
      %v729 = vpop.f32.mrb[0].mxu0
      %v730 = vadd.f32 0.0, %v729
      %v731 = vpop.f32.mrb[0].mxu0
      %732 = vmatprep.mubr.f32.mxu0 0.0
      %733 = vmatmul.mubr.f32.gmra.mrb[0].mxu0 %v569
      %v734 = vpop.f32.mrb[0].mxu0
      %v735 = vadd.f32 0.0, %v734
      %v736 = vpop.f32.mrb[0].mxu0
      %737 = vmatprep.mubr.f32.mxu0 0.0
      %738 = vmatmul.mubr.f32.gmra.mrb[0].mxu0 %v572
      %v739 = vpop.f32.mrb[0].mxu0
      %v740 = vadd.f32 0.0, %v739
      %v741 = vpop.f32.mrb[0].mxu0
      %742 = vmatprep.mubr.f32.mxu0 0.0
      %743 = vmatmul.mubr.f32.gmra.mrb[0].mxu0 %v575
      %v744 = vpop.f32.mrb[0].mxu0
      %v745 = vadd.f32 0.0, %v744
      %v746 = vpop.f32.mrb[0].mxu0
      %747 = vmatprep.mubr.f32.mxu0 0.0
      %748 = vmatmul.mubr.f32.gmra.mrb[0].mxu0 %v578
      %v749 = vpop.f32.mrb[0].mxu0
      %v750 = vadd.f32 0.0, %v749
      %v751 = vpop.f32.mrb[0].mxu0
      %752 = vmatprep.mubr.f32.mxu0 0.0
      %753 = vmatmul.mubr.f32.gmra.mrb[0].mxu0 %v581
      %v754 = vpop.f32.mrb[0].mxu0
      %v755 = vadd.f32 0.0, %v754
      %v756 = vpop.f32.mrb[0].mxu0
      %757 = vmatprep.mubr.f32.mxu0 0.0
      %758 = vmatmul.mubr.f32.gmra.mrb[0].mxu0 %v584
      %v759 = vpop.f32.mrb[0].mxu0
      %v760 = vadd.f32 0.0, %v759
      %v761 = vpop.f32.mrb[0].mxu0
      %762 = vmatprep.mubr.f32.mxu0 0.0
      %763 = vmatmul.mubr.f32.gmra.mrb[0].mxu0 %v587
      %v764 = vpop.f32.mrb[0].mxu0
      %v765 = vadd.f32 0.0, %v764
      %v766 = vpop.f32.mrb[0].mxu0
      %767 = vmatprep.mubr.f32.mxu0 0.0
      %768 = vmatmul.mubr.f32.gmra.mrb[0].mxu0 %v590
      %v769 = vpop.f32.mrb[0].mxu0
      %v770 = vadd.f32 0.0, %v769
      %v771 = vpop.f32.mrb[0].mxu0
      %772 = vmatprep.mubr.f32.mxu0 0.0
      %773 = vmatmul.mubr.f32.gmra.mrb[0].mxu0 %v593
      %v774 = vpop.f32.mrb[0].mxu0
      %v775 = vadd.f32 0.0, %v774
      %v776 = vpop.f32.mrb[0].mxu0
      %777 = vmatprep.mubr.f32.mxu0 0.0
      %778 = vmatmul.mubr.f32.gmra.mrb[0].mxu0 %v596
      %v779 = vpop.f32.mrb[0].mxu0
      %v780 = vadd.f32 0.0, %v779
      %v781 = vpop.f32.mrb[0].mxu0
      %782 = vmatprep.mubr.f32.mxu0 0.0
      %783 = vmatmul.mubr.f32.gmra.mrb[0].mxu0 %v599
      %v784 = vpop.f32.mrb[0].mxu0
      %v785 = vadd.f32 0.0, %v784
      %v786 = vpop.f32.mrb[0].mxu0
      %787 = vmatprep.mubr.f32.mxu0 0.0
      %788 = vmatmul.mubr.f32.gmra.mrb[0].mxu0 %v602
      %v789 = vpop.f32.mrb[0].mxu0
      %v790 = vadd.f32 0.0, %v789
      %v791 = vpop.f32.mrb[0].mxu0
      %792 = vmatprep.mubr.f32.mxu0 0.0
      %793 = vmatmul.mubr.f32.gmra.mrb[0].mxu0 %v605
      %v794 = vpop.f32.mrb[0].mxu0
      %v795 = vadd.f32 0.0, %v794
      %v796 = vpop.f32.mrb[0].mxu0
      %797 = vmatprep.mubr.f32.mxu0 0.0
      %798 = vmatmul.mubr.f32.gmra.mrb[0].mxu0 %v608
      %v799 = vpop.f32.mrb[0].mxu0
      %v800 = vadd.f32 0.0, %v799
      %v801 = vpop.f32.mrb[0].mxu0
      %802 = vmatprep.mubr.f32.mxu0 0.0
      %803 = vmatmul.mubr.f32.gmra.mrb[0].mxu0 %v611
      %v804 = vpop.f32.mrb[0].mxu0
      %v805 = vadd.f32 0.0, %v804
      %v806 = vpop.f32.mrb[0].mxu0
      %807 = vmatprep.mubr.f32.mxu0 0.0
      %808 = vmatmul.mubr.f32.gmra.mrb[0].mxu0 %v614
      %v809 = vpop.f32.mrb[0].mxu0
      %v810 = vadd.f32 0.0, %v809
      %v811 = vpop.f32.mrb[0].mxu0
      %812 = vmatprep.mubr.f32.mxu0 0.0
      %813 = vmatmul.mubr.f32.gmra.mrb[0].mxu0 %v617
      %v814 = vpop.f32.mrb[0].mxu0
      %v815 = vadd.f32 0.0, %v814
      %v816 = vpop.f32.mrb[0].mxu0
      %817 = vmatprep.mubr.f32.mxu0 0.0
      %818 = vmatmul.mubr.f32.gmra.mrb[0].mxu0 %v620
      %v819 = vpop.f32.mrb[0].mxu0
      %v820 = vadd.f32 0.0, %v819
      %v821 = vpop.f32.mrb[0].mxu0
      %822 = vmatprep.mubr.f32.mxu0 0.0
      %823 = vmatmul.mubr.f32.gmra.mrb[0].mxu0 %v623
      %v824 = vpop.f32.mrb[0].mxu0
      %v825 = vadd.f32 0.0, %v824
      %v826 = vpop.f32.mrb[0].mxu0
      %827 = vmatprep.mubr.f32.mxu0 0.0
      %828 = vmatmul.mubr.f32.gmra.mrb[0].mxu0 %v626
      %v829 = vpop.f32.mrb[0].mxu0
      %v830 = vadd.f32 0.0, %v829
      %v831 = vpop.f32.mrb[0].mxu0
      %832 = vmatprep.mubr.f32.mxu0 0.0
      %833 = vmatmul.mubr.f32.gmra.mrb[0].mxu0 %v629
      %v834 = vpop.f32.mrb[0].mxu0
      %v835 = vadd.f32 0.0, %v834
      %v836 = vpop.f32.mrb[0].mxu0
      %837 = vmatprep.mubr.f32.mxu0 0.0
      %838 = vmatmul.mubr.f32.gmra.mrb[0].mxu0 %v632
      %v839 = vpop.f32.mrb[0].mxu0
      %v840 = vadd.f32 0.0, %v839
      %v841 = vpop.f32.mrb[0].mxu0
      %842 = vmatprep.mubr.f32.mxu0 0.0
      %843 = vmatmul.mubr.f32.gmra.mrb[0].mxu0 %v635
      %v844 = vpop.f32.mrb[0].mxu0
      %v845 = vadd.f32 0.0, %v844
      %v846 = vpop.f32.mrb[0].mxu0
      %847 = vmatprep.mubr.f32.mxu0 0.0
      %848 = vmatmul.mubr.f32.gmra.mrb[0].mxu0 %v638
      %v849 = vpop.f32.mrb[0].mxu0
      %v850 = vadd.f32 0.0, %v849
      %v851 = vpop.f32.mrb[0].mxu0
      %852 = vmatprep.mubr.f32.mxu0 0.0
      %853 = vmatmul.mubr.f32.gmra.mrb[0].mxu0 %v641
      %v854 = vpop.f32.mrb[0].mxu0
      %v855 = vadd.f32 0.0, %v854
      %v856 = vpop.f32.mrb[0].mxu0
      %857 = vmatprep.mubr.f32.mxu0 0.0
      %858 = vmatmul.mubr.f32.gmra.mrb[0].mxu0 %v644
      %v859 = vpop.f32.mrb[0].mxu0
      %v860 = vadd.f32 0.0, %v859
      %v861 = vpop.f32.mrb[0].mxu0
      %862 = vmatprep.mubr.f32.mxu0 0.0
      %863 = vmatmul.mubr.f32.gmra.mrb[0].mxu0 %v647
      %v864 = vpop.f32.mrb[0].mxu0
      %v865 = vadd.f32 0.0, %v864
      %v866 = vpop.f32.mrb[0].mxu0
      %867 = vmatprep.mubr.f32.mxu0 0.0
      %868 = vmatmul.mubr.f32.gmra.mrb[0].mxu0 %v650
      %v869 = vpop.f32.mrb[0].mxu0
      %v870 = vadd.f32 0.0, %v869
      %v871 = vpop.f32.mrb[0].mxu0
      %872 = vmatprep.mubr.f32.mxu0 0.0
      %873 = vmatmul.mubr.f32.gmra.mrb[0].mxu0 %v653
      %v874 = vpop.f32.mrb[0].mxu0
      %v875 = vadd.f32 0.0, %v874
      %v876 = vpop.f32.mrb[0].mxu0
      %877 = vmatprep.mubr.f32.mxu0 0.0
      %878 = vmatmul.mubr.f32.gmra.mrb[0].mxu0 %v656
      %v879 = vpop.f32.mrb[0].mxu0
      %v880 = vadd.f32 0.0, %v879
      %v881 = vpop.f32.mrb[0].mxu0
      %882 = vdwg.mxu0
      %v883 = vmax.f32 %v725, 0.0
      %v884 = vmax.f32 %v730, 0.0
      %v885 = vmax.f32 %v735, 0.0
      %v886 = vmax.f32 %v740, 0.0
      %v887 = vmax.f32 %v745, 0.0
      %v888 = vmax.f32 %v750, 0.0
      %v889 = vmax.f32 %v755, 0.0
      %v890 = vmax.f32 %v760, 0.0
      %v891 = vmax.f32 %v765, 0.0
      %v892 = vmax.f32 %v770, 0.0
      %v893 = vmax.f32 %v775, 0.0
      %v894 = vmax.f32 %v780, 0.0
      %v895 = vmax.f32 %v785, 0.0
      %v896 = vmax.f32 %v790, 0.0
      %v897 = vmax.f32 %v795, 0.0
      %v898 = vmax.f32 %v800, 0.0
      %v899 = vmax.f32 %v805, 0.0
      %v900 = vmax.f32 %v810, 0.0
      %v901 = vmax.f32 %v815, 0.0
      %v902 = vmax.f32 %v820, 0.0
      %v903 = vmax.f32 %v825, 0.0
      %v904 = vmax.f32 %v830, 0.0
      %v905 = vmax.f32 %v835, 0.0
      %v906 = vmax.f32 %v840, 0.0
      %v907 = vmax.f32 %v845, 0.0
      %v908 = vmax.f32 %v850, 0.0
      %v909 = vmax.f32 %v855, 0.0
      %v910 = vmax.f32 %v860, 0.0
      %v911 = vmax.f32 %v865, 0.0
      %v912 = vmax.f32 %v870, 0.0
      %v913 = vmax.f32 %v875, 0.0
      %v914 = vmax.f32 %v880, 0.0
      %915 = vmatprep.subr.mxu0 0.0
      %916 = vmatpush1.msra.mxu0 %v883
      %917 = vmatprep.subr.mxu0 0.0
      %918 = vmatpush1.msra.mxu0 %v884
      %919 = vmatprep.subr.mxu0 0.0
      %920 = vmatpush1.msra.mxu0 %v885
      %921 = vmatprep.subr.mxu0 0.0
      %922 = vmatpush1.msra.mxu0 %v886
      %923 = vmatprep.subr.mxu0 0.0
      %924 = vmatpush1.msra.mxu0 %v887
      %925 = vmatprep.subr.mxu0 0.0
      %926 = vmatpush1.msra.mxu0 %v888
      %927 = vmatprep.subr.mxu0 0.0
      %928 = vmatpush1.msra.mxu0 %v889
      %929 = vmatprep.subr.mxu0 0.0
      %930 = vmatpush1.msra.mxu0 %v890
      %931 = vmatprep.subr.mxu0 0.0
      %932 = vmatpush1.msra.mxu0 %v891
      %933 = vmatprep.subr.mxu0 0.0
      %934 = vmatpush1.msra.mxu0 %v892
      %935 = vmatprep.subr.mxu0 0.0
      %936 = vmatpush1.msra.mxu0 %v893
      %937 = vmatprep.subr.mxu0 0.0
      %938 = vmatpush1.msra.mxu0 %v894
      %939 = vmatprep.subr.mxu0 0.0
      %940 = vmatpush1.msra.mxu0 %v895
      %941 = vmatprep.subr.mxu0 0.0
      %942 = vmatpush1.msra.mxu0 %v896
      %943 = vmatprep.subr.mxu0 0.0
      %944 = vmatpush1.msra.mxu0 %v897
      %945 = vmatprep.subr.mxu0 0.0
      %946 = vmatpush1.msra.mxu0 %v898
      %947 = vmatprep.subr.mxu0 0.0
      %948 = vmatpush1.msra.mxu0 %v899
      %949 = vmatprep.subr.mxu0 0.0
      %950 = vmatpush1.msra.mxu0 %v900
      %951 = vmatprep.subr.mxu0 0.0
      %952 = vmatpush1.msra.mxu0 %v901
      %953 = vmatprep.subr.mxu0 0.0
      %954 = vmatpush1.msra.mxu0 %v902
      %955 = vmatprep.subr.mxu0 0.0
      %956 = vmatpush1.msra.mxu0 %v903
      %957 = vmatprep.subr.mxu0 0.0
      %958 = vmatpush1.msra.mxu0 %v904
      %959 = vmatprep.subr.mxu0 0.0
      %960 = vmatpush1.msra.mxu0 %v905
      %961 = vmatprep.subr.mxu0 0.0
      %962 = vmatpush1.msra.mxu0 %v906
      %963 = vmatprep.subr.mxu0 0.0
      %964 = vmatpush1.msra.mxu0 %v907
      %965 = vmatprep.subr.mxu0 0.0
      %966 = vmatpush1.msra.mxu0 %v908
      %967 = vmatprep.subr.mxu0 0.0
      %968 = vmatpush1.msra.mxu0 %v909
      %969 = vmatprep.subr.mxu0 0.0
      %970 = vmatpush1.msra.mxu0 %v910
      %971 = vmatprep.subr.mxu0 0.0
      %972 = vmatpush1.msra.mxu0 %v911
      %973 = vmatprep.subr.mxu0 0.0
      %974 = vmatpush1.msra.mxu0 %v912
      %975 = vmatprep.subr.mxu0 0.0
      %976 = vmatpush1.msra.mxu0 %v913
      %977 = vmatprep.subr.mxu0 0.0
      %978 = vmatpush1.msra.mxu0 %v914
      %979 = vmatprep.mubr.f32.mxu0 0.00390625
      %980 = vmatmul.mubr.f32.gmra.mrb[0].mxu0 0.00390625
      %v981 = vpop.f32.mrb[0].mxu0
      %v982 = vadd.f32 0.0, %v981
      %v983 = vpop.f32.mrb[0].mxu0
      %984 = vdwg.mxu0
      %v985 = vld [vmem:[%s5] sm:$0xff]
      %v986 = vld [vmem:[%s5 + $0x8] sm:$0xff]
      %v987 = vld [vmem:[%s5 + $0x10] sm:$0xff]
      %v988 = vld [vmem:[%s5 + $0x18] sm:$0xff]
      %v989 = vld [vmem:[%s5 + $0x20] sm:$0xff]
      %v990 = vld [vmem:[%s5 + $0x28] sm:$0xff]
      %v991 = vld [vmem:[%s5 + $0x30] sm:$0xff]
      %v992 = vld [vmem:[%s5 + $0x38] sm:$0xff]
      %v993 = vld [vmem:[%s6] sm:$0x3]
      %v995 = vlaneseq
      %v996 = vshrl.u32 %v995, 7
      %v997 = vsub.s32 0, %v996
      %v998 = vrot.slane %v993, %v997
      %v1001 = vsel %vm561, %v982, 0
      %1003 = vmatprep.subr.mxu0 %v986
      %1004 = vmatpush1.msra.mxu0 %v985
      %1005 = vmatprep.subr.mxu0 %v988
      %1006 = vmatpush1.msra.mxu0 %v987
      %1007 = vmatprep.subr.mxu0 %v990
      %1008 = vmatpush1.msra.mxu0 %v989
      %1009 = vmatprep.subr.mxu0 %v992
      %1010 = vmatpush1.msra.mxu0 %v991
      %1011 = vmatprep.subr.mxu0 0.0
      %1012 = vmatpush1.msra.mxu0 0.0
      %1013 = vmatprep.subr.mxu0 0.0
      %1014 = vmatpush1.msra.mxu0 0.0
      %1015 = vmatprep.subr.mxu0 0.0
      %1016 = vmatpush1.msra.mxu0 0.0
      %1017 = vmatprep.subr.mxu0 0.0
      %1018 = vmatpush1.msra.mxu0 0.0
      %1019 = vmatprep.subr.mxu0 0.0
      %1020 = vmatpush1.msra.mxu0 0.0
      %1021 = vmatprep.subr.mxu0 0.0
      %1022 = vmatpush1.msra.mxu0 0.0
      %1023 = vmatprep.subr.mxu0 0.0
      %1024 = vmatpush1.msra.mxu0 0.0
      %1025 = vmatprep.subr.mxu0 0.0
      %1026 = vmatpush1.msra.mxu0 0.0
      %1027 = vmatprep.subr.mxu0 0.0
      %1028 = vmatpush1.msra.mxu0 0.0
      %1029 = vmatprep.subr.mxu0 0.0
      %1030 = vmatpush1.msra.mxu0 0.0
      %1031 = vmatprep.subr.mxu0 0.0
      %1032 = vmatpush1.msra.mxu0 0.0
      %1033 = vmatprep.subr.mxu0 0.0
      %1034 = vmatpush1.msra.mxu0 0.0
      %1035 = vmatprep.subr.mxu0 0.0
      %1036 = vmatpush1.msra.mxu0 0.0
      %1037 = vmatprep.subr.mxu0 0.0
      %1038 = vmatpush1.msra.mxu0 0.0
      %1039 = vmatprep.subr.mxu0 0.0
      %1040 = vmatpush1.msra.mxu0 0.0
      %1041 = vmatprep.subr.mxu0 0.0
      %1042 = vmatpush1.msra.mxu0 0.0
      %1043 = vmatprep.subr.mxu0 0.0
      %1044 = vmatpush1.msra.mxu0 0.0
      %1045 = vmatprep.subr.mxu0 0.0
      %1046 = vmatpush1.msra.mxu0 0.0
      %1047 = vmatprep.subr.mxu0 0.0
      %1048 = vmatpush1.msra.mxu0 0.0
      %1049 = vmatprep.subr.mxu0 0.0
      %1050 = vmatpush1.msra.mxu0 0.0
      %1051 = vmatprep.subr.mxu0 0.0
      %1052 = vmatpush1.msra.mxu0 0.0
      %1053 = vmatprep.subr.mxu0 0.0
      %1054 = vmatpush1.msra.mxu0 0.0
      %1055 = vmatprep.subr.mxu0 0.0
      %1056 = vmatpush1.msra.mxu0 0.0
      %1057 = vmatprep.subr.mxu0 0.0
      %1058 = vmatpush1.msra.mxu0 0.0
      %1059 = vmatprep.subr.mxu0 0.0
      %1060 = vmatpush1.msra.mxu0 0.0
      %1061 = vmatprep.subr.mxu0 0.0
      %1062 = vmatpush1.msra.mxu0 0.0
      %1063 = vmatprep.subr.mxu0 0.0
      %1064 = vmatpush1.msra.mxu0 0.0
      %1065 = vmatprep.subr.mxu0 0.0
      %1066 = vmatpush1.msra.mxu0 0.0
      %1067 = vmatprep.mubr.f32.mxu0 0.0
      %1068 = vmatmul.mubr.f32.gmra.mrb[0].mxu0 %v1001
      %v1069 = vpop.f32.mrb[0].mxu0
      %v1070 = vadd.f32 %v998, %v1069
      %v1071 = vpop.f32.mrb[0].mxu0
      %1072 = vdwg.mxu0
      %v1073 = vld [vmem:[%s7] sm:$0xff]
      %v1074 = vld [vmem:[%s7 + $0x8] sm:$0xff]
      %v1075 = vld [vmem:[%s7 + $0x10] sm:$0xff]
      %v1076 = vld [vmem:[%s7 + $0x18] sm:$0xff]
      %v1077 = vld [vmem:[%s510] sm:$0x77]
      %v1079 = vcombine.high %v1077, %v1077
      %vm1080 = vcmask 23552
      %v1082 = vsel %vm1080, %v1073, 0
      %v1085 = vsel %vm1080, %v1074, 0
      %v1088 = vsel %vm1080, %v1075, 0
      %v1091 = vsel %vm1080, %v1076, 0
      %vm1093 = vcmask 1042432
      %v1094 = vsel %vm1093, %v1077, 0
      %v1096 = vsel %vm1093, %v1079, 0
      %1098 = vmatprep.subr.mxu0 %v1096
      %1099 = vmatpush1.msra.mxu0 %v1094
      %1100 = vmatprep.subr.mxu0 0.0
      %1101 = vmatpush1.msra.mxu0 0.0
      %1102 = vmatprep.subr.mxu0 0.0
      %1103 = vmatpush1.msra.mxu0 0.0
      %1104 = vmatprep.subr.mxu0 0.0
      %1105 = vmatpush1.msra.mxu0 0.0
      %1106 = vmatprep.subr.mxu0 0.0
      %1107 = vmatpush1.msra.mxu0 0.0
      %1108 = vmatprep.subr.mxu0 0.0
      %1109 = vmatpush1.msra.mxu0 0.0
      %1110 = vmatprep.subr.mxu0 0.0
      %1111 = vmatpush1.msra.mxu0 0.0
      %1112 = vmatprep.subr.mxu0 0.0
      %1113 = vmatpush1.msra.mxu0 0.0
      %1114 = vmatprep.subr.mxu0 0.0
      %1115 = vmatpush1.msra.mxu0 0.0
      %1116 = vmatprep.subr.mxu0 0.0
      %1117 = vmatpush1.msra.mxu0 0.0
      %1118 = vmatprep.subr.mxu0 0.0
      %1119 = vmatpush1.msra.mxu0 0.0
      %1120 = vmatprep.subr.mxu0 0.0
      %1121 = vmatpush1.msra.mxu0 0.0
      %1122 = vmatprep.subr.mxu0 0.0
      %1123 = vmatpush1.msra.mxu0 0.0
      %1124 = vmatprep.subr.mxu0 0.0
      %1125 = vmatpush1.msra.mxu0 0.0
      %1126 = vmatprep.subr.mxu0 0.0
      %1127 = vmatpush1.msra.mxu0 0.0
      %1128 = vmatprep.subr.mxu0 0.0
      %1129 = vmatpush1.msra.mxu0 0.0
      %1130 = vmatprep.subr.mxu0 0.0
      %1131 = vmatpush1.msra.mxu0 0.0
      %1132 = vmatprep.subr.mxu0 0.0
      %1133 = vmatpush1.msra.mxu0 0.0
      %1134 = vmatprep.subr.mxu0 0.0
      %1135 = vmatpush1.msra.mxu0 0.0
      %1136 = vmatprep.subr.mxu0 0.0
      %1137 = vmatpush1.msra.mxu0 0.0
      %1138 = vmatprep.subr.mxu0 0.0
      %1139 = vmatpush1.msra.mxu0 0.0
      %1140 = vmatprep.subr.mxu0 0.0
      %1141 = vmatpush1.msra.mxu0 0.0
      %1142 = vmatprep.subr.mxu0 0.0
      %1143 = vmatpush1.msra.mxu0 0.0
      %1144 = vmatprep.subr.mxu0 0.0
      %1145 = vmatpush1.msra.mxu0 0.0
      %1146 = vmatprep.subr.mxu0 0.0
      %1147 = vmatpush1.msra.mxu0 0.0
      %1148 = vmatprep.subr.mxu0 0.0
      %1149 = vmatpush1.msra.mxu0 0.0
      %1150 = vmatprep.subr.mxu0 0.0
      %1151 = vmatpush1.msra.mxu0 0.0
      %1152 = vmatprep.subr.mxu0 0.0
      %1153 = vmatpush1.msra.mxu0 0.0
      %1154 = vmatprep.subr.mxu0 0.0
      %1155 = vmatpush1.msra.mxu0 0.0
      %1156 = vmatprep.subr.mxu0 0.0
      %1157 = vmatpush1.msra.mxu0 0.0
      %1158 = vmatprep.subr.mxu0 0.0
      %1159 = vmatpush1.msra.mxu0 0.0
      %1160 = vmatprep.subr.mxu0 0.0
      %1161 = vmatpush1.msra.mxu0 0.0
      %1162 = vmatprep.mubr.f32.mxu0 0.0
      %1163 = vmatmul.mubr.f32.gmra.mrb[0].mxu0 %v1082
      %v1164 = vpop.f32.mrb[0].mxu0
      %v1165 = vadd.f32 0.0, %v1164
      %v1166 = vpop.f32.mrb[0].mxu0
      %v1167 = vadd.f32 0.0, %v1166
      %1168 = vmatprep.mubr.f32.mxu0 0.0
      %1169 = vmatmul.mubr.f32.gmra.mrb[0].mxu0 %v1085
      %v1170 = vpop.f32.mrb[0].mxu0
      %v1171 = vadd.f32 0.0, %v1170
      %v1172 = vpop.f32.mrb[0].mxu0
      %v1173 = vadd.f32 0.0, %v1172
      %1174 = vmatprep.mubr.f32.mxu0 0.0
      %1175 = vmatmul.mubr.f32.gmra.mrb[0].mxu0 %v1088
      %v1176 = vpop.f32.mrb[0].mxu0
      %v1177 = vadd.f32 0.0, %v1176
      %v1178 = vpop.f32.mrb[0].mxu0
      %v1179 = vadd.f32 0.0, %v1178
      %1180 = vmatprep.mubr.f32.mxu0 0.0
      %1181 = vmatmul.mubr.f32.gmra.mrb[0].mxu0 %v1091
      %v1182 = vpop.f32.mrb[0].mxu0
      %v1183 = vadd.f32 0.0, %v1182
      %v1184 = vpop.f32.mrb[0].mxu0
      %v1185 = vadd.f32 0.0, %v1184
      %1186 = vdwg.mxu0
      %vm1187 = vcmp.ge.f32.partialorder %v1165, 0.0
      %vm1188 = vcmp.ge.f32.partialorder %v1167, 0.0
      %vm1189 = vcmp.ge.f32.partialorder %v1171, 0.0
      %vm1190 = vcmp.ge.f32.partialorder %v1173, 0.0
      %vm1191 = vcmp.ge.f32.partialorder %v1177, 0.0
      %vm1192 = vcmp.ge.f32.partialorder %v1179, 0.0
      %vm1193 = vcmp.ge.f32.partialorder %v1183, 0.0
      %vm1194 = vcmp.ge.f32.partialorder %v1185, 0.0
      %v1195 = vmul.f32 %v1165, 0.2
      %v1196 = vmul.f32 %v1167, 0.2
      %v1197 = vmul.f32 %v1171, 0.2
      %v1198 = vmul.f32 %v1173, 0.2
      %v1199 = vmul.f32 %v1177, 0.2
      %v1200 = vmul.f32 %v1179, 0.2
      %v1201 = vmul.f32 %v1183, 0.2
      %v1202 = vmul.f32 %v1185, 0.2
      %v1203 = vsel %vm1187, %v1165, %v1195
      %v1204 = vsel %vm1188, %v1167, %v1196
      %v1205 = vsel %vm1189, %v1171, %v1197
      %v1206 = vsel %vm1190, %v1173, %v1198
      %v1207 = vsel %vm1191, %v1177, %v1199
      %v1208 = vsel %vm1192, %v1179, %v1200
      %v1209 = vsel %vm1193, %v1183, %v1201
      %v1210 = vsel %vm1194, %v1185, %v1202
      %v1211 = vld [vmem:[%s8] sm:$0xff]
      %v1212 = vld [vmem:[%s8 + $0x8] sm:$0xff]
      %v1213 = vld [vmem:[%s8 + $0x10] sm:$0xff]
      %v1214 = vld [vmem:[%s8 + $0x18] sm:$0xff]
      %v1215 = vld [vmem:[%s9] sm:$0x1]
      %v1217 = vsel %vm561, %v1070, 0
      %1219 = vmatprep.subr.mxu0 0.0
      %1220 = vmatpush1.msra.mxu0 %v1211
      %1221 = vmatprep.subr.mxu0 0.0
      %1222 = vmatpush1.msra.mxu0 %v1212
      %1223 = vmatprep.subr.mxu0 0.0
      %1224 = vmatpush1.msra.mxu0 %v1213
      %1225 = vmatprep.subr.mxu0 0.0
      %1226 = vmatpush1.msra.mxu0 %v1214
      %1227 = vmatprep.subr.mxu0 0.0
      %1228 = vmatpush1.msra.mxu0 0.0
      %1229 = vmatprep.subr.mxu0 0.0
      %1230 = vmatpush1.msra.mxu0 0.0
      %1231 = vmatprep.subr.mxu0 0.0
      %1232 = vmatpush1.msra.mxu0 0.0
      %1233 = vmatprep.subr.mxu0 0.0
      %1234 = vmatpush1.msra.mxu0 0.0
      %1235 = vmatprep.subr.mxu0 0.0
      %1236 = vmatpush1.msra.mxu0 0.0
      %1237 = vmatprep.subr.mxu0 0.0
      %1238 = vmatpush1.msra.mxu0 0.0
      %1239 = vmatprep.subr.mxu0 0.0
      %1240 = vmatpush1.msra.mxu0 0.0
      %1241 = vmatprep.subr.mxu0 0.0
      %1242 = vmatpush1.msra.mxu0 0.0
      %1243 = vmatprep.subr.mxu0 0.0
      %1244 = vmatpush1.msra.mxu0 0.0
      %1245 = vmatprep.subr.mxu0 0.0
      %1246 = vmatpush1.msra.mxu0 0.0
      %1247 = vmatprep.subr.mxu0 0.0
      %1248 = vmatpush1.msra.mxu0 0.0
      %1249 = vmatprep.subr.mxu0 0.0
      %1250 = vmatpush1.msra.mxu0 0.0
      %1251 = vmatprep.subr.mxu0 0.0
      %1252 = vmatpush1.msra.mxu0 0.0
      %1253 = vmatprep.subr.mxu0 0.0
      %1254 = vmatpush1.msra.mxu0 0.0
      %1255 = vmatprep.subr.mxu0 0.0
      %1256 = vmatpush1.msra.mxu0 0.0
      %1257 = vmatprep.subr.mxu0 0.0
      %1258 = vmatpush1.msra.mxu0 0.0
      %1259 = vmatprep.subr.mxu0 0.0
      %1260 = vmatpush1.msra.mxu0 0.0
      %1261 = vmatprep.subr.mxu0 0.0
      %1262 = vmatpush1.msra.mxu0 0.0
      %1263 = vmatprep.subr.mxu0 0.0
      %1264 = vmatpush1.msra.mxu0 0.0
      %1265 = vmatprep.subr.mxu0 0.0
      %1266 = vmatpush1.msra.mxu0 0.0
      %1267 = vmatprep.subr.mxu0 0.0
      %1268 = vmatpush1.msra.mxu0 0.0
      %1269 = vmatprep.subr.mxu0 0.0
      %1270 = vmatpush1.msra.mxu0 0.0
      %1271 = vmatprep.subr.mxu0 0.0
      %1272 = vmatpush1.msra.mxu0 0.0
      %1273 = vmatprep.subr.mxu0 0.0
      %1274 = vmatpush1.msra.mxu0 0.0
      %1275 = vmatprep.subr.mxu0 0.0
      %1276 = vmatpush1.msra.mxu0 0.0
      %1277 = vmatprep.subr.mxu0 0.0
      %1278 = vmatpush1.msra.mxu0 0.0
      %1279 = vmatprep.subr.mxu0 0.0
      %1280 = vmatpush1.msra.mxu0 0.0
      %1281 = vmatprep.subr.mxu0 0.0
      %1282 = vmatpush1.msra.mxu0 0.0
      %1283 = vmatprep.mubr.f32.mxu0 0.0
      %1284 = vmatmul.mubr.f32.gmra.mrb[0].mxu0 %v1217
      %v1285 = vpop.f32.mrb[0].mxu0
      %v1286 = vadd.f32 %v1215, %v1285
      %v1287 = vpop.f32.mrb[0].mxu0
      %1288 = vdwg.mxu0
      %v1289 = vld [vmem:[%s10] sm:$0xff]
      %v1290 = vld [vmem:[%s10 + $0x8] sm:$0xff]
      %v1291 = vld [vmem:[%s10 + $0x10] sm:$0xff]
      %v1292 = vld [vmem:[%s10 + $0x18] sm:$0xff]
      %v1293 = vlaneseq
      %v1294 = vshrl.u32 %v1293, 7
      %v1295 = vsub.s32 0, %v1294
      %v1296 = vrot.slane %v1286, %v1295
      %v1297 = vmul.f32 %v1289, %v1296
      %v1298 = vmul.f32 %v1290, %v1296
      %v1299 = vmul.f32 %v1291, %v1296
      %v1300 = vmul.f32 %v1292, %v1296
      %v1301 = vmul.f32 %v1297, %v1297
      %v1302 = vmul.f32 %v1298, %v1298
      %v1303 = vmul.f32 %v1299, %v1299
      %v1304 = vmul.f32 %v1300, %v1300
      %v1305 = vsel %vm561, %v1301, 0.0
      %1306 = vadd.xlane.f32.xlu0 %v1305
      %v1307 = vpop.xlane.xlu0 %1306
      %v1308 = vsel %vm561, %v1302, 0.0
      %1309 = vadd.xlane.f32.xlu0 %v1308
      %v1310 = vpop.xlane.xlu0 %1309
      %v1311 = vsel %vm561, %v1303, 0.0
      %1312 = vadd.xlane.f32.xlu0 %v1311
      %v1313 = vpop.xlane.xlu0 %1312
      %v1314 = vsel %vm561, %v1304, 0.0
      %1315 = vadd.xlane.f32.xlu0 %v1314
      %v1316 = vpop.xlane.xlu0 %1315
      %v1317 = vadd.f32 %v1307, 1e-08
      %v1318 = vadd.f32 %v1310, 1e-08
      %v1319 = vadd.f32 %v1313, 1e-08
      %v1320 = vadd.f32 %v1316, 1e-08
      %v1321 = vrsqrt.pop %v1317
      %v1322 = vrsqrt.pop %v1318
      %v1323 = vrsqrt.pop %v1319
      %v1324 = vrsqrt.pop %v1320
      %v1325 = vmul.f32 %v1297, %v1321
      %v1326 = vmul.f32 %v1298, %v1322
      %v1327 = vmul.f32 %v1299, %v1323
      %v1328 = vmul.f32 %v1300, %v1324
      %v1329 = vld [vmem:[%s11] sm:$0xff]
      %v1330 = vld [vmem:[%s11 + $0x8] sm:$0xff]
      %v1331 = vld [vmem:[%s11 + $0x10] sm:$0xff]
      %v1332 = vld [vmem:[%s11 + $0x18] sm:$0xff]
      %1334 = vset.pattern.permute.xlu0 0
      %1335 = vperm.xlu0 %1334, %v1329
      %v1336 = vpop.permute.xlu0 %1335
      %1339 = vset.pattern.permute.xlu0 0
      %1340 = vperm.xlu0 %1339, %v1330
      %v1341 = vpop.permute.xlu0 %1340
      %1344 = vset.pattern.permute.xlu0 0
      %1345 = vperm.xlu0 %1344, %v1331
      %v1346 = vpop.permute.xlu0 %1345
      %1349 = vset.pattern.permute.xlu0 0
      %1350 = vperm.xlu0 %1349, %v1332
      %v1351 = vpop.permute.xlu0 %1350
      %v1354 = vsel %vm561, %v1325, 0
      %v1357 = vsel %vm561, %v1326, 0
      %v1360 = vsel %vm561, %v1327, 0
      %v1363 = vsel %vm561, %v1328, 0
      %1365 = vmatprep.subr.mxu0 %v1204
      %1366 = vmatpush1.msra.mxu0 %v1203
      %1367 = vmatprep.subr.mxu0 %v1206
      %1368 = vmatpush1.msra.mxu0 %v1205
      %1369 = vmatprep.subr.mxu0 %v1208
      %1370 = vmatpush1.msra.mxu0 %v1207
      %1371 = vmatprep.subr.mxu0 %v1210
      %1372 = vmatpush1.msra.mxu0 %v1209
      %1373 = vmatprep.subr.mxu0 0.0
      %1374 = vmatpush1.msra.mxu0 0.0
      %1375 = vmatprep.subr.mxu0 0.0
      %1376 = vmatpush1.msra.mxu0 0.0
      %1377 = vmatprep.subr.mxu0 0.0
      %1378 = vmatpush1.msra.mxu0 0.0
      %1379 = vmatprep.subr.mxu0 0.0
      %1380 = vmatpush1.msra.mxu0 0.0
      %1381 = vmatprep.subr.mxu0 0.0
      %1382 = vmatpush1.msra.mxu0 0.0
      %1383 = vmatprep.subr.mxu0 0.0
      %1384 = vmatpush1.msra.mxu0 0.0
      %1385 = vmatprep.subr.mxu0 0.0
      %1386 = vmatpush1.msra.mxu0 0.0
      %1387 = vmatprep.subr.mxu0 0.0
      %1388 = vmatpush1.msra.mxu0 0.0
      %1389 = vmatprep.subr.mxu0 0.0
      %1390 = vmatpush1.msra.mxu0 0.0
      %1391 = vmatprep.subr.mxu0 0.0
      %1392 = vmatpush1.msra.mxu0 0.0
      %1393 = vmatprep.subr.mxu0 0.0
      %1394 = vmatpush1.msra.mxu0 0.0
      %1395 = vmatprep.subr.mxu0 0.0
      %1396 = vmatpush1.msra.mxu0 0.0
      %1397 = vmatprep.subr.mxu0 0.0
      %1398 = vmatpush1.msra.mxu0 0.0
      %1399 = vmatprep.subr.mxu0 0.0
      %1400 = vmatpush1.msra.mxu0 0.0
      %1401 = vmatprep.subr.mxu0 0.0
      %1402 = vmatpush1.msra.mxu0 0.0
      %1403 = vmatprep.subr.mxu0 0.0
      %1404 = vmatpush1.msra.mxu0 0.0
      %1405 = vmatprep.subr.mxu0 0.0
      %1406 = vmatpush1.msra.mxu0 0.0
      %1407 = vmatprep.subr.mxu0 0.0
      %1408 = vmatpush1.msra.mxu0 0.0
      %1409 = vmatprep.subr.mxu0 0.0
      %1410 = vmatpush1.msra.mxu0 0.0
      %1411 = vmatprep.subr.mxu0 0.0
      %1412 = vmatpush1.msra.mxu0 0.0
      %1413 = vmatprep.subr.mxu0 0.0
      %1414 = vmatpush1.msra.mxu0 0.0
      %1415 = vmatprep.subr.mxu0 0.0
      %1416 = vmatpush1.msra.mxu0 0.0
      %1417 = vmatprep.subr.mxu0 0.0
      %1418 = vmatpush1.msra.mxu0 0.0
      %1419 = vmatprep.subr.mxu0 0.0
      %1420 = vmatpush1.msra.mxu0 0.0
      %1421 = vmatprep.subr.mxu0 0.0
      %1422 = vmatpush1.msra.mxu0 0.0
      %1423 = vmatprep.subr.mxu0 0.0
      %1424 = vmatpush1.msra.mxu0 0.0
      %1425 = vmatprep.subr.mxu0 0.0
      %1426 = vmatpush1.msra.mxu0 0.0
      %1427 = vmatprep.subr.mxu0 0.0
      %1428 = vmatpush1.msra.mxu0 0.0
      %1429 = vmatprep.mubr.f32.mxu0 0.0
      %1430 = vmatmul.mubr.f32.gmra.mrb[0].mxu0 %v1354
      %v1431 = vpop.f32.mrb[0].mxu0
      %v1432 = vadd.f32 %v1336, %v1431
      %v1433 = vpop.f32.mrb[0].mxu0
      %v1434 = vadd.f32 %v1336, %v1433
      %1435 = vmatprep.mubr.f32.mxu0 0.0
      %1436 = vmatmul.mubr.f32.gmra.mrb[0].mxu0 %v1357
      %v1437 = vpop.f32.mrb[0].mxu0
      %v1438 = vadd.f32 %v1341, %v1437
      %v1439 = vpop.f32.mrb[0].mxu0
      %v1440 = vadd.f32 %v1341, %v1439
      %1441 = vmatprep.mubr.f32.mxu0 0.0
      %1442 = vmatmul.mubr.f32.gmra.mrb[0].mxu0 %v1360
      %v1443 = vpop.f32.mrb[0].mxu0
      %v1444 = vadd.f32 %v1346, %v1443
      %v1445 = vpop.f32.mrb[0].mxu0
      %v1446 = vadd.f32 %v1346, %v1445
      %1447 = vmatprep.mubr.f32.mxu0 0.0
      %1448 = vmatmul.mubr.f32.gmra.mrb[0].mxu0 %v1363
      %v1449 = vpop.f32.mrb[0].mxu0
      %v1450 = vadd.f32 %v1351, %v1449
      %v1451 = vpop.f32.mrb[0].mxu0
      %v1452 = vadd.f32 %v1351, %v1451
      %1453 = vdwg.mxu0
      %vm1454 = vcmp.ge.f32.partialorder %v1432, 0.0
      %vm1455 = vcmp.ge.f32.partialorder %v1434, 0.0
      %vm1456 = vcmp.ge.f32.partialorder %v1438, 0.0
      %vm1457 = vcmp.ge.f32.partialorder %v1440, 0.0
      %vm1458 = vcmp.ge.f32.partialorder %v1444, 0.0
      %vm1459 = vcmp.ge.f32.partialorder %v1446, 0.0
      %vm1460 = vcmp.ge.f32.partialorder %v1450, 0.0
      %vm1461 = vcmp.ge.f32.partialorder %v1452, 0.0
      %v1462 = vmul.f32 %v1432, 0.2
      %v1463 = vmul.f32 %v1434, 0.2
      %v1464 = vmul.f32 %v1438, 0.2
      %v1465 = vmul.f32 %v1440, 0.2
      %v1466 = vmul.f32 %v1444, 0.2
      %v1467 = vmul.f32 %v1446, 0.2
      %v1468 = vmul.f32 %v1450, 0.2
      %v1469 = vmul.f32 %v1452, 0.2
      %v1470 = vsel %vm1454, %v1432, %v1462
      %v1471 = vsel %vm1455, %v1434, %v1463
      %v1472 = vsel %vm1456, %v1438, %v1464
      %v1473 = vsel %vm1457, %v1440, %v1465
      %v1474 = vsel %vm1458, %v1444, %v1466
      %v1475 = vsel %vm1459, %v1446, %v1467
      %v1476 = vsel %vm1460, %v1450, %v1468
      %v1477 = vsel %vm1461, %v1452, %v1469
      %v1478 = vmul.f32 %v1470, 1.4142135
      %v1479 = vmul.f32 %v1471, 1.4142135
      %v1480 = vmul.f32 %v1472, 1.4142135
      %v1481 = vmul.f32 %v1473, 1.4142135
      %v1482 = vmul.f32 %v1474, 1.4142135
      %v1483 = vmul.f32 %v1475, 1.4142135
      %v1484 = vmul.f32 %v1476, 1.4142135
      %v1485 = vmul.f32 %v1477, 1.4142135
      %s1486 = scalar_lea.vmem %s8, 32
      %v1487 = vld [vmem:[%s1486] sm:$0xff]
      %v1488 = vld [vmem:[%s1486 + $0x8] sm:$0xff]
      %v1489 = vld [vmem:[%s1486 + $0x10] sm:$0xff]
      %v1490 = vld [vmem:[%s1486 + $0x18] sm:$0xff]
      %s1491 = scalar_lea.vmem %s9, 1
      %v1492 = vld [vmem:[%s1491] sm:$0x1]
      %1493 = vrot.lane.b32.xlu0 %v1070, 96
      %v1494 = vpop.permute.xlu0 %1493
      %v1495 = vsel %vm561, %v1494, 0
      %1497 = vmatprep.subr.mxu0 0.0
      %1498 = vmatpush1.msra.mxu0 %v1487
      %1499 = vmatprep.subr.mxu0 0.0
      %1500 = vmatpush1.msra.mxu0 %v1488
      %1501 = vmatprep.subr.mxu0 0.0
      %1502 = vmatpush1.msra.mxu0 %v1489
      %1503 = vmatprep.subr.mxu0 0.0
      %1504 = vmatpush1.msra.mxu0 %v1490
      %1505 = vmatprep.subr.mxu0 0.0
      %1506 = vmatpush1.msra.mxu0 0.0
      %1507 = vmatprep.subr.mxu0 0.0
      %1508 = vmatpush1.msra.mxu0 0.0
      %1509 = vmatprep.subr.mxu0 0.0
      %1510 = vmatpush1.msra.mxu0 0.0
      %1511 = vmatprep.subr.mxu0 0.0
      %1512 = vmatpush1.msra.mxu0 0.0
      %1513 = vmatprep.subr.mxu0 0.0
      %1514 = vmatpush1.msra.mxu0 0.0
      %1515 = vmatprep.subr.mxu0 0.0
      %1516 = vmatpush1.msra.mxu0 0.0
      %1517 = vmatprep.subr.mxu0 0.0
      %1518 = vmatpush1.msra.mxu0 0.0
      %1519 = vmatprep.subr.mxu0 0.0
      %1520 = vmatpush1.msra.mxu0 0.0
      %1521 = vmatprep.subr.mxu0 0.0
      %1522 = vmatpush1.msra.mxu0 0.0
      %1523 = vmatprep.subr.mxu0 0.0
      %1524 = vmatpush1.msra.mxu0 0.0
      %1525 = vmatprep.subr.mxu0 0.0
      %1526 = vmatpush1.msra.mxu0 0.0
      %1527 = vmatprep.subr.mxu0 0.0
      %1528 = vmatpush1.msra.mxu0 0.0
      %1529 = vmatprep.subr.mxu0 0.0
      %1530 = vmatpush1.msra.mxu0 0.0
      %1531 = vmatprep.subr.mxu0 0.0
      %1532 = vmatpush1.msra.mxu0 0.0
      %1533 = vmatprep.subr.mxu0 0.0
      %1534 = vmatpush1.msra.mxu0 0.0
      %1535 = vmatprep.subr.mxu0 0.0
      %1536 = vmatpush1.msra.mxu0 0.0
      %1537 = vmatprep.subr.mxu0 0.0
      %1538 = vmatpush1.msra.mxu0 0.0
      %1539 = vmatprep.subr.mxu0 0.0
      %1540 = vmatpush1.msra.mxu0 0.0
      %1541 = vmatprep.subr.mxu0 0.0
      %1542 = vmatpush1.msra.mxu0 0.0
      %1543 = vmatprep.subr.mxu0 0.0
      %1544 = vmatpush1.msra.mxu0 0.0
      %1545 = vmatprep.subr.mxu0 0.0
      %1546 = vmatpush1.msra.mxu0 0.0
      %1547 = vmatprep.subr.mxu0 0.0
      %1548 = vmatpush1.msra.mxu0 0.0
      %1549 = vmatprep.subr.mxu0 0.0
      %1550 = vmatpush1.msra.mxu0 0.0
      %1551 = vmatprep.subr.mxu0 0.0
      %1552 = vmatpush1.msra.mxu0 0.0
      %1553 = vmatprep.subr.mxu0 0.0
      %1554 = vmatpush1.msra.mxu0 0.0
      %1555 = vmatprep.subr.mxu0 0.0
      %1556 = vmatpush1.msra.mxu0 0.0
      %1557 = vmatprep.subr.mxu0 0.0
      %1558 = vmatpush1.msra.mxu0 0.0
      %1559 = vmatprep.subr.mxu0 0.0
      %1560 = vmatpush1.msra.mxu0 0.0
      %1561 = vmatprep.mubr.f32.mxu0 0.0
      %1562 = vmatmul.mubr.f32.gmra.mrb[0].mxu0 %v1495
      %v1563 = vpop.f32.mrb[0].mxu0
      %v1564 = vadd.f32 %v1492, %v1563
      %v1565 = vpop.f32.mrb[0].mxu0
      %1566 = vdwg.mxu0
      %s1567 = scalar_lea.vmem %s10, 32
      %v1568 = vld [vmem:[%s1567] sm:$0xff]
      %v1569 = vld [vmem:[%s1567 + $0x8] sm:$0xff]
      %v1570 = vld [vmem:[%s1567 + $0x10] sm:$0xff]
      %v1571 = vld [vmem:[%s1567 + $0x18] sm:$0xff]
      %v1572 = vlaneseq
      %v1573 = vshrl.u32 %v1572, 7
      %v1574 = vsub.s32 0, %v1573
      %v1575 = vrot.slane %v1564, %v1574
      %v1576 = vmul.f32 %v1568, %v1575
      %v1577 = vmul.f32 %v1569, %v1575
      %v1578 = vmul.f32 %v1570, %v1575
      %v1579 = vmul.f32 %v1571, %v1575
      %v1580 = vmul.f32 %v1576, %v1576
      %v1581 = vmul.f32 %v1577, %v1577
      %v1582 = vmul.f32 %v1578, %v1578
      %v1583 = vmul.f32 %v1579, %v1579
      %v1584 = vsel %vm561, %v1580, 0.0
      %1585 = vadd.xlane.f32.xlu0 %v1584
      %v1586 = vpop.xlane.xlu0 %1585
      %v1587 = vsel %vm561, %v1581, 0.0
      %1588 = vadd.xlane.f32.xlu0 %v1587
      %v1589 = vpop.xlane.xlu0 %1588
      %v1590 = vsel %vm561, %v1582, 0.0
      %1591 = vadd.xlane.f32.xlu0 %v1590
      %v1592 = vpop.xlane.xlu0 %1591
      %v1593 = vsel %vm561, %v1583, 0.0
      %1594 = vadd.xlane.f32.xlu0 %v1593
      %v1595 = vpop.xlane.xlu0 %1594
      %v1596 = vadd.f32 %v1586, 1e-08
      %v1597 = vadd.f32 %v1589, 1e-08
      %v1598 = vadd.f32 %v1592, 1e-08
      %v1599 = vadd.f32 %v1595, 1e-08
      %v1600 = vrsqrt.pop %v1596
      %v1601 = vrsqrt.pop %v1597
      %v1602 = vrsqrt.pop %v1598
      %v1603 = vrsqrt.pop %v1599
      %v1604 = vmul.f32 %v1576, %v1600
      %v1605 = vmul.f32 %v1577, %v1601
      %v1606 = vmul.f32 %v1578, %v1602
      %v1607 = vmul.f32 %v1579, %v1603
      %s1608 = scalar_lea.vmem %s11, 32
      %v1609 = vld [vmem:[%s1608] sm:$0xff]
      %v1610 = vld [vmem:[%s1608 + $0x8] sm:$0xff]
      %v1611 = vld [vmem:[%s1608 + $0x10] sm:$0xff]
      %v1612 = vld [vmem:[%s1608 + $0x18] sm:$0xff]
      %1614 = vset.pattern.permute.xlu0 0
      %1615 = vperm.xlu0 %1614, %v1609
      %v1616 = vpop.permute.xlu0 %1615
      %1619 = vset.pattern.permute.xlu0 0
      %1620 = vperm.xlu0 %1619, %v1610
      %v1621 = vpop.permute.xlu0 %1620
      %1624 = vset.pattern.permute.xlu0 0
      %1625 = vperm.xlu0 %1624, %v1611
      %v1626 = vpop.permute.xlu0 %1625
      %1629 = vset.pattern.permute.xlu0 0
      %1630 = vperm.xlu0 %1629, %v1612
      %v1631 = vpop.permute.xlu0 %1630
      %v1634 = vsel %vm561, %v1604, 0
      %v1637 = vsel %vm561, %v1605, 0
      %v1640 = vsel %vm561, %v1606, 0
      %v1643 = vsel %vm561, %v1607, 0
      %1645 = vmatprep.subr.mxu0 %v1479
      %1646 = vmatpush1.msra.mxu0 %v1478
      %1647 = vmatprep.subr.mxu0 %v1481
      %1648 = vmatpush1.msra.mxu0 %v1480
      %1649 = vmatprep.subr.mxu0 %v1483
      %1650 = vmatpush1.msra.mxu0 %v1482
      %1651 = vmatprep.subr.mxu0 %v1485
      %1652 = vmatpush1.msra.mxu0 %v1484
      %1653 = vmatprep.subr.mxu0 0.0
      %1654 = vmatpush1.msra.mxu0 0.0
      %1655 = vmatprep.subr.mxu0 0.0
      %1656 = vmatpush1.msra.mxu0 0.0
      %1657 = vmatprep.subr.mxu0 0.0
      %1658 = vmatpush1.msra.mxu0 0.0
      %1659 = vmatprep.subr.mxu0 0.0
      %1660 = vmatpush1.msra.mxu0 0.0
      %1661 = vmatprep.subr.mxu0 0.0
      %1662 = vmatpush1.msra.mxu0 0.0
      %1663 = vmatprep.subr.mxu0 0.0
      %1664 = vmatpush1.msra.mxu0 0.0
      %1665 = vmatprep.subr.mxu0 0.0
      %1666 = vmatpush1.msra.mxu0 0.0
      %1667 = vmatprep.subr.mxu0 0.0
      %1668 = vmatpush1.msra.mxu0 0.0
      %1669 = vmatprep.subr.mxu0 0.0
      %1670 = vmatpush1.msra.mxu0 0.0
      %1671 = vmatprep.subr.mxu0 0.0
      %1672 = vmatpush1.msra.mxu0 0.0
      %1673 = vmatprep.subr.mxu0 0.0
      %1674 = vmatpush1.msra.mxu0 0.0
      %1675 = vmatprep.subr.mxu0 0.0
      %1676 = vmatpush1.msra.mxu0 0.0
      %1677 = vmatprep.subr.mxu0 0.0
      %1678 = vmatpush1.msra.mxu0 0.0
      %1679 = vmatprep.subr.mxu0 0.0
      %1680 = vmatpush1.msra.mxu0 0.0
      %1681 = vmatprep.subr.mxu0 0.0
      %1682 = vmatpush1.msra.mxu0 0.0
      %1683 = vmatprep.subr.mxu0 0.0
      %1684 = vmatpush1.msra.mxu0 0.0
      %1685 = vmatprep.subr.mxu0 0.0
      %1686 = vmatpush1.msra.mxu0 0.0
      %1687 = vmatprep.subr.mxu0 0.0
      %1688 = vmatpush1.msra.mxu0 0.0
      %1689 = vmatprep.subr.mxu0 0.0
      %1690 = vmatpush1.msra.mxu0 0.0
      %1691 = vmatprep.subr.mxu0 0.0
      %1692 = vmatpush1.msra.mxu0 0.0
      %1693 = vmatprep.subr.mxu0 0.0
      %1694 = vmatpush1.msra.mxu0 0.0
      %1695 = vmatprep.subr.mxu0 0.0
      %1696 = vmatpush1.msra.mxu0 0.0
      %1697 = vmatprep.subr.mxu0 0.0
      %1698 = vmatpush1.msra.mxu0 0.0
      %1699 = vmatprep.subr.mxu0 0.0
      %1700 = vmatpush1.msra.mxu0 0.0
      %1701 = vmatprep.subr.mxu0 0.0
      %1702 = vmatpush1.msra.mxu0 0.0
      %1703 = vmatprep.subr.mxu0 0.0
      %1704 = vmatpush1.msra.mxu0 0.0
      %1705 = vmatprep.subr.mxu0 0.0
      %1706 = vmatpush1.msra.mxu0 0.0
      %1707 = vmatprep.subr.mxu0 0.0
      %1708 = vmatpush1.msra.mxu0 0.0
      %1709 = vmatprep.mubr.f32.mxu0 0.0
      %1710 = vmatmul.mubr.f32.gmra.mrb[0].mxu0 %v1634
      %v1711 = vpop.f32.mrb[0].mxu0
      %v1712 = vadd.f32 %v1616, %v1711
      %v1713 = vpop.f32.mrb[0].mxu0
      %v1714 = vadd.f32 %v1616, %v1713
      %1715 = vmatprep.mubr.f32.mxu0 0.0
      %1716 = vmatmul.mubr.f32.gmra.mrb[0].mxu0 %v1637
      %v1717 = vpop.f32.mrb[0].mxu0
      %v1718 = vadd.f32 %v1621, %v1717
      %v1719 = vpop.f32.mrb[0].mxu0
      %v1720 = vadd.f32 %v1621, %v1719
      %1721 = vmatprep.mubr.f32.mxu0 0.0
      %1722 = vmatmul.mubr.f32.gmra.mrb[0].mxu0 %v1640
      %v1723 = vpop.f32.mrb[0].mxu0
      %v1724 = vadd.f32 %v1626, %v1723
      %v1725 = vpop.f32.mrb[0].mxu0
      %v1726 = vadd.f32 %v1626, %v1725
      %1727 = vmatprep.mubr.f32.mxu0 0.0
      %1728 = vmatmul.mubr.f32.gmra.mrb[0].mxu0 %v1643
      %v1729 = vpop.f32.mrb[0].mxu0
      %v1730 = vadd.f32 %v1631, %v1729
      %v1731 = vpop.f32.mrb[0].mxu0
      %v1732 = vadd.f32 %v1631, %v1731
      %1733 = vdwg.mxu0
      %vm1734 = vcmp.ge.f32.partialorder %v1712, 0.0
      %vm1735 = vcmp.ge.f32.partialorder %v1714, 0.0
      %vm1736 = vcmp.ge.f32.partialorder %v1718, 0.0
      %vm1737 = vcmp.ge.f32.partialorder %v1720, 0.0
      %vm1738 = vcmp.ge.f32.partialorder %v1724, 0.0
      %vm1739 = vcmp.ge.f32.partialorder %v1726, 0.0
      %vm1740 = vcmp.ge.f32.partialorder %v1730, 0.0
      %vm1741 = vcmp.ge.f32.partialorder %v1732, 0.0
      %v1742 = vmul.f32 %v1712, 0.2
      %v1743 = vmul.f32 %v1714, 0.2
      %v1744 = vmul.f32 %v1718, 0.2
      %v1745 = vmul.f32 %v1720, 0.2
      %v1746 = vmul.f32 %v1724, 0.2
      %v1747 = vmul.f32 %v1726, 0.2
      %v1748 = vmul.f32 %v1730, 0.2
      %v1749 = vmul.f32 %v1732, 0.2
      %v1750 = vsel %vm1734, %v1712, %v1742
      %v1751 = vsel %vm1735, %v1714, %v1743
      %v1752 = vsel %vm1736, %v1718, %v1744
      %v1753 = vsel %vm1737, %v1720, %v1745
      %v1754 = vsel %vm1738, %v1724, %v1746
      %v1755 = vsel %vm1739, %v1726, %v1747
      %v1756 = vsel %vm1740, %v1730, %v1748
      %v1757 = vsel %vm1741, %v1732, %v1749
      %v1758 = vmul.f32 %v1750, 1.4142135
      %v1759 = vmul.f32 %v1751, 1.4142135
      %v1760 = vmul.f32 %v1752, 1.4142135
      %v1761 = vmul.f32 %v1753, 1.4142135
      %v1762 = vmul.f32 %v1754, 1.4142135
      %v1763 = vmul.f32 %v1755, 1.4142135
      %v1764 = vmul.f32 %v1756, 1.4142135
      %v1765 = vmul.f32 %v1757, 1.4142135
      %v1766 = vld [vmem:[%s12] sm:$0x7]
      %v1767 = vld [vmem:[%s13] sm:$0x7]
      %1769 = vset.pattern.permute.xlu0 0
      %1770 = vperm.xlu0 %1769, %v1767
      %v1771 = vpop.permute.xlu0 %1770
      %v1774 = vsel %vm561, %v1766, 0
      %1776 = vmatprep.subr.mxu0 %v1759
      %1777 = vmatpush1.msra.mxu0 %v1758
      %1778 = vmatprep.subr.mxu0 %v1761
      %1779 = vmatpush1.msra.mxu0 %v1760
      %1780 = vmatprep.subr.mxu0 %v1763
      %1781 = vmatpush1.msra.mxu0 %v1762
      %1782 = vmatprep.subr.mxu0 %v1765
      %1783 = vmatpush1.msra.mxu0 %v1764
      %1784 = vmatprep.subr.mxu0 0.0
      %1785 = vmatpush1.msra.mxu0 0.0
      %1786 = vmatprep.subr.mxu0 0.0
      %1787 = vmatpush1.msra.mxu0 0.0
      %1788 = vmatprep.subr.mxu0 0.0
      %1789 = vmatpush1.msra.mxu0 0.0
      %1790 = vmatprep.subr.mxu0 0.0
      %1791 = vmatpush1.msra.mxu0 0.0
      %1792 = vmatprep.subr.mxu0 0.0
      %1793 = vmatpush1.msra.mxu0 0.0
      %1794 = vmatprep.subr.mxu0 0.0
      %1795 = vmatpush1.msra.mxu0 0.0
      %1796 = vmatprep.subr.mxu0 0.0
      %1797 = vmatpush1.msra.mxu0 0.0
      %1798 = vmatprep.subr.mxu0 0.0
      %1799 = vmatpush1.msra.mxu0 0.0
      %1800 = vmatprep.subr.mxu0 0.0
      %1801 = vmatpush1.msra.mxu0 0.0
      %1802 = vmatprep.subr.mxu0 0.0
      %1803 = vmatpush1.msra.mxu0 0.0
      %1804 = vmatprep.subr.mxu0 0.0
      %1805 = vmatpush1.msra.mxu0 0.0
      %1806 = vmatprep.subr.mxu0 0.0
      %1807 = vmatpush1.msra.mxu0 0.0
      %1808 = vmatprep.subr.mxu0 0.0
      %1809 = vmatpush1.msra.mxu0 0.0
      %1810 = vmatprep.subr.mxu0 0.0
      %1811 = vmatpush1.msra.mxu0 0.0
      %1812 = vmatprep.subr.mxu0 0.0
      %1813 = vmatpush1.msra.mxu0 0.0
      %1814 = vmatprep.subr.mxu0 0.0
      %1815 = vmatpush1.msra.mxu0 0.0
      %1816 = vmatprep.subr.mxu0 0.0
      %1817 = vmatpush1.msra.mxu0 0.0
      %1818 = vmatprep.subr.mxu0 0.0
      %1819 = vmatpush1.msra.mxu0 0.0
      %1820 = vmatprep.subr.mxu0 0.0
      %1821 = vmatpush1.msra.mxu0 0.0
      %1822 = vmatprep.subr.mxu0 0.0
      %1823 = vmatpush1.msra.mxu0 0.0
      %1824 = vmatprep.subr.mxu0 0.0
      %1825 = vmatpush1.msra.mxu0 0.0
      %1826 = vmatprep.subr.mxu0 0.0
      %1827 = vmatpush1.msra.mxu0 0.0
      %1828 = vmatprep.subr.mxu0 0.0
      %1829 = vmatpush1.msra.mxu0 0.0
      %1830 = vmatprep.subr.mxu0 0.0
      %1831 = vmatpush1.msra.mxu0 0.0
      %1832 = vmatprep.subr.mxu0 0.0
      %1833 = vmatpush1.msra.mxu0 0.0
      %1834 = vmatprep.subr.mxu0 0.0
      %1835 = vmatpush1.msra.mxu0 0.0
      %1836 = vmatprep.subr.mxu0 0.0
      %1837 = vmatpush1.msra.mxu0 0.0
      %1838 = vmatprep.subr.mxu0 0.0
      %1839 = vmatpush1.msra.mxu0 0.0
      %1840 = vmatprep.mubr.f32.mxu0 0.0
      %1841 = vmatmul.mubr.f32.gmra.mrb[0].mxu0 %v1774
      %v1842 = vpop.f32.mrb[0].mxu0
      %v1843 = vadd.f32 %v1771, %v1842
      %v1844 = vpop.f32.mrb[0].mxu0
      %v1845 = vadd.f32 %v1771, %v1844
      %1846 = vdwg.mxu0
      %v1847 = vld [vmem:[%s514] sm:$0x3]
      %v1849 = vlaneseq
      %v1850 = vshrl.u32 %v1849, 7
      %v1851 = vsub.s32 0, %v1850
      %v1852 = vrot.slane %v1847, %v1851
      %v1853 = vlaneseq
      %v1854 = vshrl.u32 %v1853, 7
      %v1855 = vsub.s32 1, %v1854
      %v1856 = vrot.slane %v1847, %v1855
      %v1859 = vmul.f32 %v1843, %v1852
      %v1860 = vmul.f32 %v1845, %v1856
      %v1861 = vld [vmem:[%s519] sm:$0x77]
      %v1862 = vsub.f32 1.0, %v1847
      %v1864 = vlaneseq
      %v1865 = vshrl.u32 %v1864, 7
      %v1866 = vsub.s32 0, %v1865
      %v1867 = vrot.slane %v1862, %v1866
      %v1868 = vlaneseq
      %v1869 = vshrl.u32 %v1868, 7
      %v1870 = vsub.s32 1, %v1869
      %v1871 = vrot.slane %v1862, %v1870
      %v1872 = vcombine.low %v1867, %v1871
      %v1874 = vmul.f32 %v1861, %v1872
      %v1876 = vcombine.high %v1874, %v1874
      %v1878 = vadd.f32 %v1859, %v1874
      %v1879 = vadd.f32 %v1860, %v1876
      %v1882 = vcombine.low %v1878, %v1879
      %1884 = vst [vmem:[%s524] sm:$0x77] %v1882
      %p1885 = scmp.lt.s32.totalorder %s25, 1
      %s1886 = scalar_select %p1885, %s25, 1
      %s1887 = smul.addr %s1886, 2
      %s1888 = smul.addr %s1887, 4
      %s1889 = scalar_lea.vmem %s14, %s1888
      // Predicated region
      $region77: #{align_model_forward.1} parent=75 // pred_check
        %p1890 = pneg %p357
      $region78: #{align_model_forward.1} parent=75 // pred_check_branch
        %1892 = sbr.rel (%p1890) target = $region80
      $region79: #{align_model_forward.1} parent=75 // pred_region
        _
      $region80: #{align_model_forward.1} parent=75 // pred_fallthru
        _
    $region76: #{align_model_forward.1} parent=5 // pred_fallthru
      _
    %p1893 = scmp.le.s32.totalorder 2, %s20
    // Predicated region
    $region81: #{align_model_forward.1} parent=5 // pred_check
      %p1894 = pneg %p1893
    $region82: #{align_model_forward.1} parent=5 // pred_check_branch
      %1896 = sbr.rel (%p1894) target = $region84
    $region83: #{align_model_forward.1} parent=5 // pred_region
      %s1897 = ssub.s32 %s20, 2
      // Predicated region
      $region85: #{align_model_forward.1} parent=83 // pred_check
        %p1898 = pneg %p363
      $region86: #{align_model_forward.1} parent=83 // pred_check_branch
        %1900 = sbr.rel (%p1898) target = $region88
      $region87: #{align_model_forward.1} parent=83 // pred_region
        %p1901 = scmp.lt.s32.totalorder %s26, 1
        %s1902 = scalar_select %p1901, %s26, 1
        %s1903 = smul.addr %s1902, 2
        %s1904 = smul.addr %s1903, 4
        %s1905 = scalar_lea.vmem %s14, %s1904
      $region88: #{align_model_forward.1} parent=83 // pred_fallthru
        _
    $region84: #{align_model_forward.1} parent=5 // pred_fallthru
      _
  $region6: #{align_model_forward.1} parent=0 // loop_footer
    %s24 = sadd.s32 1, %s20
  $region7: #{align_model_forward.1} parent=0 // loop_footer_branch
    %19 = sbr.rel target = $region3
  $region8: #{align_model_forward.1} parent=0 // loop_exit
    _

</llo_original>
